<compile_context>
chip_gen: v5e
topology: v5e:2x2
jax: 0.10.0
libtpu: 0.0.40
codegen_flags: <defaults>
</compile_context>

<pallas_src>
import jax
import jax.numpy as jnp
from jax.experimental import pallas as pl
from jax.experimental.pallas import tpu as pltpu


def _round_up(x, m):
    return (x + m - 1) // m * m


def _matmul_dtype():
    kind = jax.devices()[0].device_kind.lower()
    # bf16 MXU path on v6e / v7x; keep f32 on v5e and unknown chips.
    return jnp.bfloat16 if ("v6" in kind or "v7" in kind) else jnp.float32


def lstm_country_kernel(seq_ref, wih_ref, whh_ref, b_ref, emb_ref,
                        fch_ref, fce_ref, fcb_ref, out_ref, xw_ref):
    """seq_ref (T*Bp,1) time-major; wih/b (1,4Hp); whh (Hp,4Hp); emb (Bp,E);
    fch (1,Hp); fce (1,E); fcb (1,1); out (Bp,1); xw scratch (T*Bp,4Hp)."""
    Bp = emb_ref.shape[0]
    Hp = whh_ref.shape[0]
    T = seq_ref.shape[0] // Bp
    mm_dtype = whh_ref.dtype

    # Prologue: input projection for all T steps in one vectorized op
    # (removes a per-step broadcast + mul-add from the serial critical path).
    xw_ref[...] = seq_ref[...] * wih_ref[...] + b_ref[...]       # (T*Bp, 4Hp)

    h = jnp.zeros((Bp, Hp), jnp.float32)
    c = jnp.zeros((Bp, Hp), jnp.float32)

    # Fully unrolled recurrence: T is tiny & static, all indices below are
    # static and every gate slice is one aligned 128-lane vreg.
    for t in range(T):
        gates = xw_ref[t * Bp:(t + 1) * Bp, :] + jnp.dot(
            h.astype(mm_dtype), whh_ref[...],
            preferred_element_type=jnp.float32)                  # (Bp, 4Hp)
        i = jax.nn.sigmoid(gates[:, 0 * Hp:1 * Hp])
        f = jax.nn.sigmoid(gates[:, 1 * Hp:2 * Hp])
        g = jnp.tanh(gates[:, 2 * Hp:3 * Hp])
        o = jax.nn.sigmoid(gates[:, 3 * Hp:4 * Hp])
        c = f * c + i * g
        h = o * jnp.tanh(c)

    # Head: split-fc (no lane-axis concat, no degenerate N=1 MXU matmul).
    out = (jnp.sum(h * fch_ref[...], axis=1, keepdims=True)
           + jnp.sum(emb_ref[...] * fce_ref[...], axis=1, keepdims=True)
           + fcb_ref[...])
    out_ref[...] = out.astype(out_ref.dtype)


def _pad_gate_vec(v, H, Hp):
    """(4H,) -> (1, 4*Hp); torch gate order (i,f,g,o); padded lanes are zero."""
    v4 = v.reshape(4, H)
    return jnp.zeros((4, Hp), v.dtype).at[:, :H].set(v4).reshape(1, 4 * Hp)


def _pad_gate_mat(w_t, H, Hp):
    """(H, 4H) -> (Hp, 4*Hp); padded rows/cols are zero."""
    w4 = w_t.reshape(H, 4, H)
    return (jnp.zeros((Hp, 4, Hp), w_t.dtype).at[:H, :, :H].set(w4)
            .reshape(Hp, 4 * Hp))


@jax.jit
def lstm_country_forward(country_ids, sequences, params):
    """country_ids: (B,) int32, sequences: (B, T, 1) float32 -> (B, 1)."""
    B, T, _ = sequences.shape
    H = params["w_hh"].shape[1]
    E = params["embedding"].shape[1]
    Bp = _round_up(B, 8)            # sublane quantum
    Hp = _round_up(H, 128)          # one full vreg lane-width per gate
    mm_dtype = _matmul_dtype()

    # Glue, fused into this jit: embedding gather, batch pad, time-major seq.
    emb = jnp.take(params["embedding"], country_ids, axis=0).astype(jnp.float32)
    emb = jnp.zeros((Bp, E), jnp.float32).at[:B].set(emb)          # (Bp, E)
    seq = sequences[:, :, 0].astype(jnp.float32)                   # (B, T)
    seq = jnp.zeros((Bp, T), jnp.float32).at[:B].set(seq)
    seq_col = seq.T.reshape(T * Bp, 1)                             # time-major

    wih = _pad_gate_vec(params["w_ih"].reshape(-1).astype(jnp.float32), H, Hp)
    bias = _pad_gate_vec((params["b_ih"] + params["b_hh"]).astype(jnp.float32),
                         H, Hp)
    whh = _pad_gate_mat(params["w_hh"].T.astype(jnp.float32), H, Hp)
    whh = whh.astype(mm_dtype)

    fcw = params["fc_w"].astype(jnp.float32)                       # (1, H+E)
    fch = jnp.zeros((1, Hp), jnp.float32).at[:, :H].set(fcw[:, :H])
    fce = fcw[:, H:].reshape(1, E)
    fcb = params["fc_b"].reshape(1, 1).astype(jnp.float32)

    vmem = pl.BlockSpec(memory_space=pltpu.MemorySpace.VMEM)
    out = pl.pallas_call(
        lstm_country_kernel,
        out_shape=jax.ShapeDtypeStruct((Bp, 1), jnp.float32),
        in_specs=[vmem] * 8,
        out_specs=vmem,
        scratch_shapes=[pltpu.VMEM((T * Bp, 4 * Hp), jnp.float32)],
    )(seq_col, wih, whh, bias, emb, fch, fce, fcb)
    return out[:B]


def reference_forward(country_ids, sequences, params):
    """Pure-JAX f32 replica of the PyTorch forward."""
    emb = jnp.take(params["embedding"], country_ids, axis=0)
    B, T, _ = sequences.shape
    H = params["w_hh"].shape[1]
    wih, whh = params["w_ih"], params["w_hh"]
    b = params["b_ih"] + params["b_hh"]
    h = jnp.zeros((B, H), jnp.float32)
    c = jnp.zeros((B, H), jnp.float32)
    for t in range(T):
        x = sequences[:, t, :]
        gates = x @ wih.T + h @ whh.T + b
        i = jax.nn.sigmoid(gates[:, :H])
        f = jax.nn.sigmoid(gates[:, H:2 * H])
        g = jnp.tanh(gates[:, 2 * H:3 * H])
        o = jax.nn.sigmoid(gates[:, 3 * H:])
        c = f * c + i * g
        h = o * jnp.tanh(c)
    combined = jnp.concatenate([h, emb], axis=1)
    return combined @ params["fc_w"].T + params["fc_b"]


def init_params(key, num_countries, embedding_dim=8, hidden_dim=64):
    ks = jax.random.split(key, 7)
    s = 1.0 / (hidden_dim ** 0.5)
    sf = 1.0 / ((hidden_dim + embedding_dim) ** 0.5)
    return {
        "embedding": jax.random.normal(ks[0], (num_countries, embedding_dim),
                                       jnp.float32),
        "w_ih": jax.random.uniform(ks[1], (4 * hidden_dim, 1),
                                   jnp.float32, -s, s),
        "w_hh": jax.random.uniform(ks[2], (4 * hidden_dim, hidden_dim),
                                   jnp.float32, -s, s),
        "b_ih": jax.random.uniform(ks[3], (4 * hidden_dim,),
                                   jnp.float32, -s, s),
        "b_hh": jax.random.uniform(ks[4], (4 * hidden_dim,),
                                   jnp.float32, -s, s),
        "fc_w": jax.random.uniform(ks[5], (1, hidden_dim + embedding_dim),
                                   jnp.float32, -sf, sf),
        "fc_b": jax.random.uniform(ks[6], (1,), jnp.float32, -sf, sf),
    }


if __name__ == "__main__":
    B, T = 2, 8
    num_countries, embedding_dim, hidden_dim = 10, 8, 64

    key = jax.random.PRNGKey(0)
    k_param, k_ids, k_seq = jax.random.split(key, 3)

    params = init_params(k_param, num_countries, embedding_dim, hidden_dim)
    country_ids = jax.random.randint(k_ids, (B,), 0, num_countries,
                                     dtype=jnp.int32)
    sequences = jax.random.normal(k_seq, (B, T, 1), jnp.float32)

    out = lstm_country_forward(country_ids, sequences, params)
    out = jax.block_until_ready(out)

    ref = reference_forward(country_ids, sequences, params)
    assert out.shape == (B, 1)
    tol = 2e-2 if _matmul_dtype() == jnp.bfloat16 else 1e-4
    assert jnp.allclose(out, ref, atol=tol, rtol=tol), (out, ref)

    print("KERNEL_OK")
</pallas_src>

<mosaic_0001>
module attributes {stable_mosaic.version = 11 : i64} {
  func.func @lstm_country_kernel(%arg0: memref<64x1xf32, #tpu.memory_space<vmem>>, %arg1: memref<1x512xf32, #tpu.memory_space<vmem>>, %arg2: memref<128x512xf32, #tpu.memory_space<vmem>>, %arg3: memref<1x512xf32, #tpu.memory_space<vmem>>, %arg4: memref<8x8xf32, #tpu.memory_space<vmem>>, %arg5: memref<1x128xf32, #tpu.memory_space<vmem>>, %arg6: memref<1x8xf32, #tpu.memory_space<vmem>>, %arg7: memref<1x1xf32, #tpu.memory_space<vmem>>, %arg8: memref<8x1xf32, #tpu.memory_space<vmem>>, %arg9: memref<64x512xf32, #tpu.memory_space<vmem>>) attributes {dimension_semantics = [], scalar_prefetch = 0 : i64, scratch_operands = 1 : i64, tpu.core_type = #tpu.core_type<tc>} {
    %c0 = arith.constant 0 : index
    %c0_0 = arith.constant 0 : index
    %0 = vector.load %arg0[%c0, %c0_0] : memref<64x1xf32, #tpu.memory_space<vmem>>, vector<64x1xf32>
    %c0_1 = arith.constant 0 : index
    %c0_2 = arith.constant 0 : index
    %1 = vector.load %arg1[%c0_1, %c0_2] : memref<1x512xf32, #tpu.memory_space<vmem>>, vector<1x512xf32>
    %2 = vector.broadcast %0 : vector<64x1xf32> to vector<64x512xf32>
    %3 = vector.broadcast %1 : vector<1x512xf32> to vector<64x512xf32>
    %4 = arith.mulf %2, %3 : vector<64x512xf32>
    %c0_3 = arith.constant 0 : index
    %c0_4 = arith.constant 0 : index
    %5 = vector.load %arg3[%c0_3, %c0_4] : memref<1x512xf32, #tpu.memory_space<vmem>>, vector<1x512xf32>
    %6 = vector.broadcast %5 : vector<1x512xf32> to vector<64x512xf32>
    %7 = arith.addf %4, %6 : vector<64x512xf32>
    %c0_5 = arith.constant 0 : index
    %c0_6 = arith.constant 0 : index
    %8 = vector.load %arg9[%c0_5, %c0_6] : memref<64x512xf32, #tpu.memory_space<vmem>>, vector<64x512xf32>
    tpu.vector_store %arg9[%c0_5, %c0_6], %7 {strides = array<i32>} : memref<64x512xf32, #tpu.memory_space<vmem>>, vector<64x512xf32>,
    %cst = arith.constant 0.000000e+00 : f32
    %9 = vector.broadcast %cst : f32 to vector<8x128xf32>
    %cst_7 = arith.constant 0.000000e+00 : f32
    %10 = vector.broadcast %cst_7 : f32 to vector<8x128xf32>
    %c0_8 = arith.constant 0 : index
    %c0_9 = arith.constant 0 : index
    %11 = vector.load %arg9[%c0_8, %c0_9] : memref<64x512xf32, #tpu.memory_space<vmem>>, vector<8x512xf32>
    %c0_10 = arith.constant 0 : index
    %c0_11 = arith.constant 0 : index
    %12 = vector.load %arg2[%c0_10, %c0_11] : memref<128x512xf32, #tpu.memory_space<vmem>>, vector<128x512xf32>
    %cst_12 = arith.constant dense<0.000000e+00> : vector<8x512xf32>
    %13 = tpu.matmul %9, %12, %cst_12 {dimension_numbers = #tpu.dot_dimension_numbers<[1], [0], [0], [1], [0, 0, 1, 1], [], []>} : vector<8x128xf32>, vector<128x512xf32>, vector<8x512xf32> -> vector<8x512xf32>
    %14 = arith.addf %11, %13 : vector<8x512xf32>
    %15 = vector.extract_strided_slice %14 {offsets = [0, 0], sizes = [8, 128], strides = [1, 1]} : vector<8x512xf32> to vector<8x128xf32>
    %16 = arith.negf %15 : vector<8x128xf32>
    %17 = math.exp %16 : vector<8x128xf32>
    %cst_13 = arith.constant 1.000000e+00 : f32
    %18 = vector.broadcast %cst_13 : f32 to vector<8x128xf32>
    %19 = arith.addf %18, %17 : vector<8x128xf32>
    %20 = arith.divf %18, %19 : vector<8x128xf32>
    %21 = vector.extract_strided_slice %14 {offsets = [0, 128], sizes = [8, 128], strides = [1, 1]} : vector<8x512xf32> to vector<8x128xf32>
    %22 = arith.negf %21 : vector<8x128xf32>
    %23 = math.exp %22 : vector<8x128xf32>
    %cst_14 = arith.constant 1.000000e+00 : f32
    %24 = vector.broadcast %cst_14 : f32 to vector<8x128xf32>
    %25 = arith.addf %24, %23 : vector<8x128xf32>
    %26 = arith.divf %24, %25 : vector<8x128xf32>
    %27 = vector.extract_strided_slice %14 {offsets = [0, 256], sizes = [8, 128], strides = [1, 1]} : vector<8x512xf32> to vector<8x128xf32>
    %28 = math.tanh %27 : vector<8x128xf32>
    %29 = vector.extract_strided_slice %14 {offsets = [0, 384], sizes = [8, 128], strides = [1, 1]} : vector<8x512xf32> to vector<8x128xf32>
    %30 = arith.negf %29 : vector<8x128xf32>
    %31 = math.exp %30 : vector<8x128xf32>
    %cst_15 = arith.constant 1.000000e+00 : f32
    %32 = vector.broadcast %cst_15 : f32 to vector<8x128xf32>
    %33 = arith.addf %32, %31 : vector<8x128xf32>
    %34 = arith.divf %32, %33 : vector<8x128xf32>
    %35 = arith.mulf %26, %10 : vector<8x128xf32>
    %36 = arith.mulf %20, %28 : vector<8x128xf32>
    %37 = arith.addf %35, %36 : vector<8x128xf32>
    %38 = math.tanh %37 : vector<8x128xf32>
    %39 = arith.mulf %34, %38 : vector<8x128xf32>
    %c8 = arith.constant 8 : index
    %c0_16 = arith.constant 0 : index
    %40 = vector.load %arg9[%c8, %c0_16] : memref<64x512xf32, #tpu.memory_space<vmem>>, vector<8x512xf32>
    %c0_17 = arith.constant 0 : index
    %c0_18 = arith.constant 0 : index
    %41 = vector.load %arg2[%c0_17, %c0_18] : memref<128x512xf32, #tpu.memory_space<vmem>>, vector<128x512xf32>
    %cst_19 = arith.constant dense<0.000000e+00> : vector<8x512xf32>
    %42 = tpu.matmul %39, %41, %cst_19 {dimension_numbers = #tpu.dot_dimension_numbers<[1], [0], [0], [1], [0, 0, 1, 1], [], []>} : vector<8x128xf32>, vector<128x512xf32>, vector<8x512xf32> -> vector<8x512xf32>
    %43 = arith.addf %40, %42 : vector<8x512xf32>
    %44 = vector.extract_strided_slice %43 {offsets = [0, 0], sizes = [8, 128], strides = [1, 1]} : vector<8x512xf32> to vector<8x128xf32>
    %45 = arith.negf %44 : vector<8x128xf32>
    %46 = math.exp %45 : vector<8x128xf32>
    %cst_20 = arith.constant 1.000000e+00 : f32
    %47 = vector.broadcast %cst_20 : f32 to vector<8x128xf32>
    %48 = arith.addf %47, %46 : vector<8x128xf32>
    %49 = arith.divf %47, %48 : vector<8x128xf32>
    %50 = vector.extract_strided_slice %43 {offsets = [0, 128], sizes = [8, 128], strides = [1, 1]} : vector<8x512xf32> to vector<8x128xf32>
    %51 = arith.negf %50 : vector<8x128xf32>
    %52 = math.exp %51 : vector<8x128xf32>
    %cst_21 = arith.constant 1.000000e+00 : f32
    %53 = vector.broadcast %cst_21 : f32 to vector<8x128xf32>
    %54 = arith.addf %53, %52 : vector<8x128xf32>
    %55 = arith.divf %53, %54 : vector<8x128xf32>
    %56 = vector.extract_strided_slice %43 {offsets = [0, 256], sizes = [8, 128], strides = [1, 1]} : vector<8x512xf32> to vector<8x128xf32>
    %57 = math.tanh %56 : vector<8x128xf32>
    %58 = vector.extract_strided_slice %43 {offsets = [0, 384], sizes = [8, 128], strides = [1, 1]} : vector<8x512xf32> to vector<8x128xf32>
    %59 = arith.negf %58 : vector<8x128xf32>
    %60 = math.exp %59 : vector<8x128xf32>
    %cst_22 = arith.constant 1.000000e+00 : f32
    %61 = vector.broadcast %cst_22 : f32 to vector<8x128xf32>
    %62 = arith.addf %61, %60 : vector<8x128xf32>
    %63 = arith.divf %61, %62 : vector<8x128xf32>
    %64 = arith.mulf %55, %37 : vector<8x128xf32>
    %65 = arith.mulf %49, %57 : vector<8x128xf32>
    %66 = arith.addf %64, %65 : vector<8x128xf32>
    %67 = math.tanh %66 : vector<8x128xf32>
    %68 = arith.mulf %63, %67 : vector<8x128xf32>
    %c16 = arith.constant 16 : index
    %c0_23 = arith.constant 0 : index
    %69 = vector.load %arg9[%c16, %c0_23] : memref<64x512xf32, #tpu.memory_space<vmem>>, vector<8x512xf32>
    %c0_24 = arith.constant 0 : index
    %c0_25 = arith.constant 0 : index
    %70 = vector.load %arg2[%c0_24, %c0_25] : memref<128x512xf32, #tpu.memory_space<vmem>>, vector<128x512xf32>
    %cst_26 = arith.constant dense<0.000000e+00> : vector<8x512xf32>
    %71 = tpu.matmul %68, %70, %cst_26 {dimension_numbers = #tpu.dot_dimension_numbers<[1], [0], [0], [1], [0, 0, 1, 1], [], []>} : vector<8x128xf32>, vector<128x512xf32>, vector<8x512xf32> -> vector<8x512xf32>
    %72 = arith.addf %69, %71 : vector<8x512xf32>
    %73 = vector.extract_strided_slice %72 {offsets = [0, 0], sizes = [8, 128], strides = [1, 1]} : vector<8x512xf32> to vector<8x128xf32>
    %74 = arith.negf %73 : vector<8x128xf32>
    %75 = math.exp %74 : vector<8x128xf32>
    %cst_27 = arith.constant 1.000000e+00 : f32
    %76 = vector.broadcast %cst_27 : f32 to vector<8x128xf32>
    %77 = arith.addf %76, %75 : vector<8x128xf32>
    %78 = arith.divf %76, %77 : vector<8x128xf32>
    %79 = vector.extract_strided_slice %72 {offsets = [0, 128], sizes = [8, 128], strides = [1, 1]} : vector<8x512xf32> to vector<8x128xf32>
    %80 = arith.negf %79 : vector<8x128xf32>
    %81 = math.exp %80 : vector<8x128xf32>
    %cst_28 = arith.constant 1.000000e+00 : f32
    %82 = vector.broadcast %cst_28 : f32 to vector<8x128xf32>
    %83 = arith.addf %82, %81 : vector<8x128xf32>
    %84 = arith.divf %82, %83 : vector<8x128xf32>
    %85 = vector.extract_strided_slice %72 {offsets = [0, 256], sizes = [8, 128], strides = [1, 1]} : vector<8x512xf32> to vector<8x128xf32>
    %86 = math.tanh %85 : vector<8x128xf32>
    %87 = vector.extract_strided_slice %72 {offsets = [0, 384], sizes = [8, 128], strides = [1, 1]} : vector<8x512xf32> to vector<8x128xf32>
    %88 = arith.negf %87 : vector<8x128xf32>
    %89 = math.exp %88 : vector<8x128xf32>
    %cst_29 = arith.constant 1.000000e+00 : f32
    %90 = vector.broadcast %cst_29 : f32 to vector<8x128xf32>
    %91 = arith.addf %90, %89 : vector<8x128xf32>
    %92 = arith.divf %90, %91 : vector<8x128xf32>
    %93 = arith.mulf %84, %66 : vector<8x128xf32>
    %94 = arith.mulf %78, %86 : vector<8x128xf32>
    %95 = arith.addf %93, %94 : vector<8x128xf32>
    %96 = math.tanh %95 : vector<8x128xf32>
    %97 = arith.mulf %92, %96 : vector<8x128xf32>
    %c24 = arith.constant 24 : index
    %c0_30 = arith.constant 0 : index
    %98 = vector.load %arg9[%c24, %c0_30] : memref<64x512xf32, #tpu.memory_space<vmem>>, vector<8x512xf32>
    %c0_31 = arith.constant 0 : index
    %c0_32 = arith.constant 0 : index
    %99 = vector.load %arg2[%c0_31, %c0_32] : memref<128x512xf32, #tpu.memory_space<vmem>>, vector<128x512xf32>
    %cst_33 = arith.constant dense<0.000000e+00> : vector<8x512xf32>
    %100 = tpu.matmul %97, %99, %cst_33 {dimension_numbers = #tpu.dot_dimension_numbers<[1], [0], [0], [1], [0, 0, 1, 1], [], []>} : vector<8x128xf32>, vector<128x512xf32>, vector<8x512xf32> -> vector<8x512xf32>
    %101 = arith.addf %98, %100 : vector<8x512xf32>
    %102 = vector.extract_strided_slice %101 {offsets = [0, 0], sizes = [8, 128], strides = [1, 1]} : vector<8x512xf32> to vector<8x128xf32>
    %103 = arith.negf %102 : vector<8x128xf32>
    %104 = math.exp %103 : vector<8x128xf32>
    %cst_34 = arith.constant 1.000000e+00 : f32
    %105 = vector.broadcast %cst_34 : f32 to vector<8x128xf32>
    %106 = arith.addf %105, %104 : vector<8x128xf32>
    %107 = arith.divf %105, %106 : vector<8x128xf32>
    %108 = vector.extract_strided_slice %101 {offsets = [0, 128], sizes = [8, 128], strides = [1, 1]} : vector<8x512xf32> to vector<8x128xf32>
    %109 = arith.negf %108 : vector<8x128xf32>
    %110 = math.exp %109 : vector<8x128xf32>
    %cst_35 = arith.constant 1.000000e+00 : f32
    %111 = vector.broadcast %cst_35 : f32 to vector<8x128xf32>
    %112 = arith.addf %111, %110 : vector<8x128xf32>
    %113 = arith.divf %111, %112 : vector<8x128xf32>
    %114 = vector.extract_strided_slice %101 {offsets = [0, 256], sizes = [8, 128], strides = [1, 1]} : vector<8x512xf32> to vector<8x128xf32>
    %115 = math.tanh %114 : vector<8x128xf32>
    %116 = vector.extract_strided_slice %101 {offsets = [0, 384], sizes = [8, 128], strides = [1, 1]} : vector<8x512xf32> to vector<8x128xf32>
    %117 = arith.negf %116 : vector<8x128xf32>
    %118 = math.exp %117 : vector<8x128xf32>
    %cst_36 = arith.constant 1.000000e+00 : f32
    %119 = vector.broadcast %cst_36 : f32 to vector<8x128xf32>
    %120 = arith.addf %119, %118 : vector<8x128xf32>
    %121 = arith.divf %119, %120 : vector<8x128xf32>
    %122 = arith.mulf %113, %95 : vector<8x128xf32>
    %123 = arith.mulf %107, %115 : vector<8x128xf32>
    %124 = arith.addf %122, %123 : vector<8x128xf32>
    %125 = math.tanh %124 : vector<8x128xf32>
    %126 = arith.mulf %121, %125 : vector<8x128xf32>
    %c32 = arith.constant 32 : index
    %c0_37 = arith.constant 0 : index
    %127 = vector.load %arg9[%c32, %c0_37] : memref<64x512xf32, #tpu.memory_space<vmem>>, vector<8x512xf32>
    %c0_38 = arith.constant 0 : index
    %c0_39 = arith.constant 0 : index
    %128 = vector.load %arg2[%c0_38, %c0_39] : memref<128x512xf32, #tpu.memory_space<vmem>>, vector<128x512xf32>
    %cst_40 = arith.constant dense<0.000000e+00> : vector<8x512xf32>
    %129 = tpu.matmul %126, %128, %cst_40 {dimension_numbers = #tpu.dot_dimension_numbers<[1], [0], [0], [1], [0, 0, 1, 1], [], []>} : vector<8x128xf32>, vector<128x512xf32>, vector<8x512xf32> -> vector<8x512xf32>
    %130 = arith.addf %127, %129 : vector<8x512xf32>
    %131 = vector.extract_strided_slice %130 {offsets = [0, 0], sizes = [8, 128], strides = [1, 1]} : vector<8x512xf32> to vector<8x128xf32>
    %132 = arith.negf %131 : vector<8x128xf32>
    %133 = math.exp %132 : vector<8x128xf32>
    %cst_41 = arith.constant 1.000000e+00 : f32
    %134 = vector.broadcast %cst_41 : f32 to vector<8x128xf32>
    %135 = arith.addf %134, %133 : vector<8x128xf32>
    %136 = arith.divf %134, %135 : vector<8x128xf32>
    %137 = vector.extract_strided_slice %130 {offsets = [0, 128], sizes = [8, 128], strides = [1, 1]} : vector<8x512xf32> to vector<8x128xf32>
    %138 = arith.negf %137 : vector<8x128xf32>
    %139 = math.exp %138 : vector<8x128xf32>
    %cst_42 = arith.constant 1.000000e+00 : f32
    %140 = vector.broadcast %cst_42 : f32 to vector<8x128xf32>
    %141 = arith.addf %140, %139 : vector<8x128xf32>
    %142 = arith.divf %140, %141 : vector<8x128xf32>
    %143 = vector.extract_strided_slice %130 {offsets = [0, 256], sizes = [8, 128], strides = [1, 1]} : vector<8x512xf32> to vector<8x128xf32>
    %144 = math.tanh %143 : vector<8x128xf32>
    %145 = vector.extract_strided_slice %130 {offsets = [0, 384], sizes = [8, 128], strides = [1, 1]} : vector<8x512xf32> to vector<8x128xf32>
    %146 = arith.negf %145 : vector<8x128xf32>
    %147 = math.exp %146 : vector<8x128xf32>
    %cst_43 = arith.constant 1.000000e+00 : f32
    %148 = vector.broadcast %cst_43 : f32 to vector<8x128xf32>
    %149 = arith.addf %148, %147 : vector<8x128xf32>
    %150 = arith.divf %148, %149 : vector<8x128xf32>
    %151 = arith.mulf %142, %124 : vector<8x128xf32>
    %152 = arith.mulf %136, %144 : vector<8x128xf32>
    %153 = arith.addf %151, %152 : vector<8x128xf32>
    %154 = math.tanh %153 : vector<8x128xf32>
    %155 = arith.mulf %150, %154 : vector<8x128xf32>
    %c40 = arith.constant 40 : index
    %c0_44 = arith.constant 0 : index
    %156 = vector.load %arg9[%c40, %c0_44] : memref<64x512xf32, #tpu.memory_space<vmem>>, vector<8x512xf32>
    %c0_45 = arith.constant 0 : index
    %c0_46 = arith.constant 0 : index
    %157 = vector.load %arg2[%c0_45, %c0_46] : memref<128x512xf32, #tpu.memory_space<vmem>>, vector<128x512xf32>
    %cst_47 = arith.constant dense<0.000000e+00> : vector<8x512xf32>
    %158 = tpu.matmul %155, %157, %cst_47 {dimension_numbers = #tpu.dot_dimension_numbers<[1], [0], [0], [1], [0, 0, 1, 1], [], []>} : vector<8x128xf32>, vector<128x512xf32>, vector<8x512xf32> -> vector<8x512xf32>
    %159 = arith.addf %156, %158 : vector<8x512xf32>
    %160 = vector.extract_strided_slice %159 {offsets = [0, 0], sizes = [8, 128], strides = [1, 1]} : vector<8x512xf32> to vector<8x128xf32>
    %161 = arith.negf %160 : vector<8x128xf32>
    %162 = math.exp %161 : vector<8x128xf32>
    %cst_48 = arith.constant 1.000000e+00 : f32
    %163 = vector.broadcast %cst_48 : f32 to vector<8x128xf32>
    %164 = arith.addf %163, %162 : vector<8x128xf32>
    %165 = arith.divf %163, %164 : vector<8x128xf32>
    %166 = vector.extract_strided_slice %159 {offsets = [0, 128], sizes = [8, 128], strides = [1, 1]} : vector<8x512xf32> to vector<8x128xf32>
    %167 = arith.negf %166 : vector<8x128xf32>
    %168 = math.exp %167 : vector<8x128xf32>
    %cst_49 = arith.constant 1.000000e+00 : f32
    %169 = vector.broadcast %cst_49 : f32 to vector<8x128xf32>
    %170 = arith.addf %169, %168 : vector<8x128xf32>
    %171 = arith.divf %169, %170 : vector<8x128xf32>
    %172 = vector.extract_strided_slice %159 {offsets = [0, 256], sizes = [8, 128], strides = [1, 1]} : vector<8x512xf32> to vector<8x128xf32>
    %173 = math.tanh %172 : vector<8x128xf32>
    %174 = vector.extract_strided_slice %159 {offsets = [0, 384], sizes = [8, 128], strides = [1, 1]} : vector<8x512xf32> to vector<8x128xf32>
    %175 = arith.negf %174 : vector<8x128xf32>
    %176 = math.exp %175 : vector<8x128xf32>
    %cst_50 = arith.constant 1.000000e+00 : f32
    %177 = vector.broadcast %cst_50 : f32 to vector<8x128xf32>
    %178 = arith.addf %177, %176 : vector<8x128xf32>
    %179 = arith.divf %177, %178 : vector<8x128xf32>
    %180 = arith.mulf %171, %153 : vector<8x128xf32>
    %181 = arith.mulf %165, %173 : vector<8x128xf32>
    %182 = arith.addf %180, %181 : vector<8x128xf32>
    %183 = math.tanh %182 : vector<8x128xf32>
    %184 = arith.mulf %179, %183 : vector<8x128xf32>
    %c48 = arith.constant 48 : index
    %c0_51 = arith.constant 0 : index
    %185 = vector.load %arg9[%c48, %c0_51] : memref<64x512xf32, #tpu.memory_space<vmem>>, vector<8x512xf32>
    %c0_52 = arith.constant 0 : index
    %c0_53 = arith.constant 0 : index
    %186 = vector.load %arg2[%c0_52, %c0_53] : memref<128x512xf32, #tpu.memory_space<vmem>>, vector<128x512xf32>
    %cst_54 = arith.constant dense<0.000000e+00> : vector<8x512xf32>
    %187 = tpu.matmul %184, %186, %cst_54 {dimension_numbers = #tpu.dot_dimension_numbers<[1], [0], [0], [1], [0, 0, 1, 1], [], []>} : vector<8x128xf32>, vector<128x512xf32>, vector<8x512xf32> -> vector<8x512xf32>
    %188 = arith.addf %185, %187 : vector<8x512xf32>
    %189 = vector.extract_strided_slice %188 {offsets = [0, 0], sizes = [8, 128], strides = [1, 1]} : vector<8x512xf32> to vector<8x128xf32>
    %190 = arith.negf %189 : vector<8x128xf32>
    %191 = math.exp %190 : vector<8x128xf32>
    %cst_55 = arith.constant 1.000000e+00 : f32
    %192 = vector.broadcast %cst_55 : f32 to vector<8x128xf32>
    %193 = arith.addf %192, %191 : vector<8x128xf32>
    %194 = arith.divf %192, %193 : vector<8x128xf32>
    %195 = vector.extract_strided_slice %188 {offsets = [0, 128], sizes = [8, 128], strides = [1, 1]} : vector<8x512xf32> to vector<8x128xf32>
    %196 = arith.negf %195 : vector<8x128xf32>
    %197 = math.exp %196 : vector<8x128xf32>
    %cst_56 = arith.constant 1.000000e+00 : f32
    %198 = vector.broadcast %cst_56 : f32 to vector<8x128xf32>
    %199 = arith.addf %198, %197 : vector<8x128xf32>
    %200 = arith.divf %198, %199 : vector<8x128xf32>
    %201 = vector.extract_strided_slice %188 {offsets = [0, 256], sizes = [8, 128], strides = [1, 1]} : vector<8x512xf32> to vector<8x128xf32>
    %202 = math.tanh %201 : vector<8x128xf32>
    %203 = vector.extract_strided_slice %188 {offsets = [0, 384], sizes = [8, 128], strides = [1, 1]} : vector<8x512xf32> to vector<8x128xf32>
    %204 = arith.negf %203 : vector<8x128xf32>
    %205 = math.exp %204 : vector<8x128xf32>
    %cst_57 = arith.constant 1.000000e+00 : f32
    %206 = vector.broadcast %cst_57 : f32 to vector<8x128xf32>
    %207 = arith.addf %206, %205 : vector<8x128xf32>
    %208 = arith.divf %206, %207 : vector<8x128xf32>
    %209 = arith.mulf %200, %182 : vector<8x128xf32>
    %210 = arith.mulf %194, %202 : vector<8x128xf32>
    %211 = arith.addf %209, %210 : vector<8x128xf32>
    %212 = math.tanh %211 : vector<8x128xf32>
    %213 = arith.mulf %208, %212 : vector<8x128xf32>
    %c56 = arith.constant 56 : index
    %c0_58 = arith.constant 0 : index
    %214 = vector.load %arg9[%c56, %c0_58] : memref<64x512xf32, #tpu.memory_space<vmem>>, vector<8x512xf32>
    %c0_59 = arith.constant 0 : index
    %c0_60 = arith.constant 0 : index
    %215 = vector.load %arg2[%c0_59, %c0_60] : memref<128x512xf32, #tpu.memory_space<vmem>>, vector<128x512xf32>
    %cst_61 = arith.constant dense<0.000000e+00> : vector<8x512xf32>
    %216 = tpu.matmul %213, %215, %cst_61 {dimension_numbers = #tpu.dot_dimension_numbers<[1], [0], [0], [1], [0, 0, 1, 1], [], []>} : vector<8x128xf32>, vector<128x512xf32>, vector<8x512xf32> -> vector<8x512xf32>
    %217 = arith.addf %214, %216 : vector<8x512xf32>
    %218 = vector.extract_strided_slice %217 {offsets = [0, 0], sizes = [8, 128], strides = [1, 1]} : vector<8x512xf32> to vector<8x128xf32>
    %219 = arith.negf %218 : vector<8x128xf32>
    %220 = math.exp %219 : vector<8x128xf32>
    %cst_62 = arith.constant 1.000000e+00 : f32
    %221 = vector.broadcast %cst_62 : f32 to vector<8x128xf32>
    %222 = arith.addf %221, %220 : vector<8x128xf32>
    %223 = arith.divf %221, %222 : vector<8x128xf32>
    %224 = vector.extract_strided_slice %217 {offsets = [0, 128], sizes = [8, 128], strides = [1, 1]} : vector<8x512xf32> to vector<8x128xf32>
    %225 = arith.negf %224 : vector<8x128xf32>
    %226 = math.exp %225 : vector<8x128xf32>
    %cst_63 = arith.constant 1.000000e+00 : f32
    %227 = vector.broadcast %cst_63 : f32 to vector<8x128xf32>
    %228 = arith.addf %227, %226 : vector<8x128xf32>
    %229 = arith.divf %227, %228 : vector<8x128xf32>
    %230 = vector.extract_strided_slice %217 {offsets = [0, 256], sizes = [8, 128], strides = [1, 1]} : vector<8x512xf32> to vector<8x128xf32>
    %231 = math.tanh %230 : vector<8x128xf32>
    %232 = vector.extract_strided_slice %217 {offsets = [0, 384], sizes = [8, 128], strides = [1, 1]} : vector<8x512xf32> to vector<8x128xf32>
    %233 = arith.negf %232 : vector<8x128xf32>
    %234 = math.exp %233 : vector<8x128xf32>
    %cst_64 = arith.constant 1.000000e+00 : f32
    %235 = vector.broadcast %cst_64 : f32 to vector<8x128xf32>
    %236 = arith.addf %235, %234 : vector<8x128xf32>
    %237 = arith.divf %235, %236 : vector<8x128xf32>
    %238 = arith.mulf %229, %211 : vector<8x128xf32>
    %239 = arith.mulf %223, %231 : vector<8x128xf32>
    %240 = arith.addf %238, %239 : vector<8x128xf32>
    %241 = math.tanh %240 : vector<8x128xf32>
    %242 = arith.mulf %237, %241 : vector<8x128xf32>
    %c0_65 = arith.constant 0 : index
    %c0_66 = arith.constant 0 : index
    %243 = vector.load %arg5[%c0_65, %c0_66] : memref<1x128xf32, #tpu.memory_space<vmem>>, vector<1x128xf32>
    %244 = vector.broadcast %243 : vector<1x128xf32> to vector<8x128xf32>
    %245 = arith.mulf %242, %244 : vector<8x128xf32>
    %cst_67 = arith.constant dense<0.000000e+00> : vector<8xf32>
    %246 = vector.multi_reduction <add>, %245, %cst_67 [1] : vector<8x128xf32> to vector<8xf32>
    %247 = vector.shape_cast %246 : vector<8xf32> to vector<8x1xf32>
    %c0_68 = arith.constant 0 : index
    %c0_69 = arith.constant 0 : index
    %248 = vector.load %arg4[%c0_68, %c0_69] : memref<8x8xf32, #tpu.memory_space<vmem>>, vector<8x8xf32>
    %c0_70 = arith.constant 0 : index
    %c0_71 = arith.constant 0 : index
    %249 = vector.load %arg6[%c0_70, %c0_71] : memref<1x8xf32, #tpu.memory_space<vmem>>, vector<1x8xf32>
    %250 = vector.broadcast %249 : vector<1x8xf32> to vector<8x8xf32>
    %251 = arith.mulf %248, %250 : vector<8x8xf32>
    %cst_72 = arith.constant dense<0.000000e+00> : vector<8xf32>
    %252 = vector.multi_reduction <add>, %251, %cst_72 [1] : vector<8x8xf32> to vector<8xf32>
    %253 = vector.shape_cast %252 : vector<8xf32> to vector<8x1xf32>
    %254 = arith.addf %247, %253 : vector<8x1xf32>
    %c0_73 = arith.constant 0 : index
    %c0_74 = arith.constant 0 : index
    %255 = vector.load %arg7[%c0_73, %c0_74] : memref<1x1xf32, #tpu.memory_space<vmem>>, vector<1x1xf32>
    %256 = vector.broadcast %255 : vector<1x1xf32> to vector<8x1xf32>
    %257 = arith.addf %254, %256 : vector<8x1xf32>
    %c0_75 = arith.constant 0 : index
    %c0_76 = arith.constant 0 : index
    %258 = vector.load %arg8[%c0_75, %c0_76] : memref<8x1xf32, #tpu.memory_space<vmem>>, vector<8x1xf32>
    tpu.vector_store %arg8[%c0_75, %c0_76], %257 {strides = array<i32>} : memref<8x1xf32, #tpu.memory_space<vmem>>, vector<8x1xf32>,
    return
  }
}

</mosaic_0001>

<llo_original>
// kernel: lstm_country_forward.1
$region0: #{lstm_country_forward.1}
  #allocation0 [shape = 'u32[]', space=smem, size = 0x4, offset = 0x4, fixed_abs, tag = 'smem constant byte address 0x4 - core index']
  #allocation1 [shape = 'u32[72,128]{1,0:T(1,128)}', space=vmem, size = 0x9000, scoped, tag = 'internal scratch']
  #allocation2 [shape = 'f32[64,512]{1,0:T(8,128)}', space=vmem, size = 0x20000, scoped, tag = 'scratch operand']
  #allocation3 [shape = 'f32[1,1]{1,0:T(1,128)S(1)}', space=vmem, size = 0x200, scoped, tag = 'scoped memory for lstm_country_forward.1']
  %s0 = inlined_call_operand.vmem [shape: f32[64,1], index: 0, kind: input, shape index: {}]
  %s1 = inlined_call_operand.vmem [shape: f32[1,512], index: 1, kind: input, shape index: {}]
  %s2 = inlined_call_operand.vmem [shape: f32[128,512], index: 2, kind: input, shape index: {}]
  %s3 = inlined_call_operand.vmem [shape: f32[1,512], index: 3, kind: input, shape index: {}]
  %s4 = inlined_call_operand.vmem [shape: f32[8,8], index: 4, kind: input, shape index: {}]
  %s5 = inlined_call_operand.vmem [shape: f32[1,128], index: 5, kind: input, shape index: {}]
  %s6 = inlined_call_operand.vmem [shape: f32[1,8], index: 6, kind: input, shape index: {}]
  %s7 = inlined_call_operand.<no memory space> [shape: f32[1,1], index: 7, kind: input, shape index: {}]
  %s8 = inlined_call_operand.vmem [shape: f32[8,1], index: 8, kind: output, shape index: {}]
  %s9 = sld [smem:[#allocation0]]
  $region42: #{lstm_country_forward.1} parent=0
    _
  %s11 = ssub.s32 1, %s9
  %s12 = scalar_select 0, %s11, %s9
  %v13 = vstv %s7
  %14 = vst [vmem:[#allocation3] sm:$0x1] %v13
  // Predicated region
  $region2: #{lstm_country_forward.1} parent=0 // pred_check
    _
  $region3: #{lstm_country_forward.1} parent=0 // pred_check_branch
    %16 = sbr.rel (0) target = $region5
  $region4: #{lstm_country_forward.1} parent=0 // pred_region
    _
  $region5: #{lstm_country_forward.1} parent=0 // pred_fallthru
    _
  // Predicated region
  $region6: #{lstm_country_forward.1} parent=0 // pred_check
    _
  $region7: #{lstm_country_forward.1} parent=0 // pred_check_branch
    %18 = sbr.rel (0) target = $region9
  $region8: #{lstm_country_forward.1} parent=0 // pred_region
    _
  $region9: #{lstm_country_forward.1} parent=0 // pred_fallthru
    _
  // Predicated region
  $region10: #{lstm_country_forward.1} parent=0 // pred_check
    _
  $region11: #{lstm_country_forward.1} parent=0 // pred_check_branch
    %20 = sbr.rel (0) target = $region13
  $region12: #{lstm_country_forward.1} parent=0 // pred_region
    _
  $region13: #{lstm_country_forward.1} parent=0 // pred_fallthru
    _
  // Predicated region
  $region14: #{lstm_country_forward.1} parent=0 // pred_check
    _
  $region15: #{lstm_country_forward.1} parent=0 // pred_check_branch
    %22 = sbr.rel (0) target = $region17
  $region16: #{lstm_country_forward.1} parent=0 // pred_region
    _
  $region17: #{lstm_country_forward.1} parent=0 // pred_fallthru
    _
  // Predicated region
  $region18: #{lstm_country_forward.1} parent=0 // pred_check
    _
  $region19: #{lstm_country_forward.1} parent=0 // pred_check_branch
    %24 = sbr.rel (0) target = $region21
  $region20: #{lstm_country_forward.1} parent=0 // pred_region
    _
  $region21: #{lstm_country_forward.1} parent=0 // pred_fallthru
    _
  // Predicated region
  $region22: #{lstm_country_forward.1} parent=0 // pred_check
    _
  $region23: #{lstm_country_forward.1} parent=0 // pred_check_branch
    %26 = sbr.rel (0) target = $region25
  $region24: #{lstm_country_forward.1} parent=0 // pred_region
    _
  $region25: #{lstm_country_forward.1} parent=0 // pred_fallthru
    _
  // Predicated region
  $region26: #{lstm_country_forward.1} parent=0 // pred_check
    _
  $region27: #{lstm_country_forward.1} parent=0 // pred_check_branch
    %28 = sbr.rel (0) target = $region29
  $region28: #{lstm_country_forward.1} parent=0 // pred_region
    _
  $region29: #{lstm_country_forward.1} parent=0 // pred_fallthru
    _
  // Predicated region
  $region30: #{lstm_country_forward.1} parent=0 // pred_check
    _
  $region31: #{lstm_country_forward.1} parent=0 // pred_check_branch
    %30 = sbr.rel (0) target = $region33
  $region32: #{lstm_country_forward.1} parent=0 // pred_region
    _
  $region33: #{lstm_country_forward.1} parent=0 // pred_fallthru
    _
  %v31 = vld [vmem:[%s0] sm:$0xff]
  %v32 = vld [vmem:[%s0 + $0x8] sm:$0xff]
  %v33 = vld [vmem:[%s0 + $0x10] sm:$0xff]
  %v34 = vld [vmem:[%s0 + $0x18] sm:$0xff]
  %v35 = vld [vmem:[%s0 + $0x20] sm:$0xff]
  %v36 = vld [vmem:[%s0 + $0x28] sm:$0xff]
  %v37 = vld [vmem:[%s0 + $0x30] sm:$0xff]
  %v38 = vld [vmem:[%s0 + $0x38] sm:$0xff]
  %v39 = vld [vmem:[%s1] sm:$0xf]
  %41 = vset.pattern.permute.xlu0 0
  %42 = vperm.xlu0 %41, %v31
  %v43 = vpop.permute.xlu0 %42
  %46 = vset.pattern.permute.xlu0 0
  %47 = vperm.xlu0 %46, %v32
  %v48 = vpop.permute.xlu0 %47
  %51 = vset.pattern.permute.xlu0 0
  %52 = vperm.xlu0 %51, %v33
  %v53 = vpop.permute.xlu0 %52
  %56 = vset.pattern.permute.xlu0 0
  %57 = vperm.xlu0 %56, %v34
  %v58 = vpop.permute.xlu0 %57
  %61 = vset.pattern.permute.xlu0 0
  %62 = vperm.xlu0 %61, %v35
  %v63 = vpop.permute.xlu0 %62
  %66 = vset.pattern.permute.xlu0 0
  %67 = vperm.xlu0 %66, %v36
  %v68 = vpop.permute.xlu0 %67
  %71 = vset.pattern.permute.xlu0 0
  %72 = vperm.xlu0 %71, %v37
  %v73 = vpop.permute.xlu0 %72
  %76 = vset.pattern.permute.xlu0 0
  %77 = vperm.xlu0 %76, %v38
  %v78 = vpop.permute.xlu0 %77
  %v81 = vperm.slane %v39, 0
  %v82 = vperm.slane %v39, 1
  %v83 = vperm.slane %v39, 2
  %v84 = vperm.slane %v39, 3
  %v89 = vmul.f32 %v43, %v81
  %v90 = vmul.f32 %v43, %v82
  %v91 = vmul.f32 %v43, %v83
  %v92 = vmul.f32 %v43, %v84
  %v93 = vmul.f32 %v48, %v81
  %v94 = vmul.f32 %v48, %v82
  %v95 = vmul.f32 %v48, %v83
  %v96 = vmul.f32 %v48, %v84
  %v97 = vmul.f32 %v53, %v81
  %v98 = vmul.f32 %v53, %v82
  %v99 = vmul.f32 %v53, %v83
  %v100 = vmul.f32 %v53, %v84
  %v101 = vmul.f32 %v58, %v81
  %v102 = vmul.f32 %v58, %v82
  %v103 = vmul.f32 %v58, %v83
  %v104 = vmul.f32 %v58, %v84
  %v105 = vmul.f32 %v63, %v81
  %v106 = vmul.f32 %v63, %v82
  %v107 = vmul.f32 %v63, %v83
  %v108 = vmul.f32 %v63, %v84
  %v109 = vmul.f32 %v68, %v81
  %v110 = vmul.f32 %v68, %v82
  %v111 = vmul.f32 %v68, %v83
  %v112 = vmul.f32 %v68, %v84
  %v113 = vmul.f32 %v73, %v81
  %v114 = vmul.f32 %v73, %v82
  %v115 = vmul.f32 %v73, %v83
  %v116 = vmul.f32 %v73, %v84
  %v117 = vmul.f32 %v78, %v81
  %v118 = vmul.f32 %v78, %v82
  %v119 = vmul.f32 %v78, %v83
  %v120 = vmul.f32 %v78, %v84
  %v121 = vld [vmem:[%s3] sm:$0xf]
  %v123 = vperm.slane %v121, 0
  %v124 = vperm.slane %v121, 1
  %v125 = vperm.slane %v121, 2
  %v126 = vperm.slane %v121, 3
  %v131 = vadd.f32 %v89, %v123
  %v132 = vadd.f32 %v90, %v124
  %v133 = vadd.f32 %v91, %v125
  %v134 = vadd.f32 %v92, %v126
  %v135 = vadd.f32 %v93, %v123
  %v136 = vadd.f32 %v94, %v124
  %v137 = vadd.f32 %v95, %v125
  %v138 = vadd.f32 %v96, %v126
  %v139 = vadd.f32 %v97, %v123
  %v140 = vadd.f32 %v98, %v124
  %v141 = vadd.f32 %v99, %v125
  %v142 = vadd.f32 %v100, %v126
  %v143 = vadd.f32 %v101, %v123
  %v144 = vadd.f32 %v102, %v124
  %v145 = vadd.f32 %v103, %v125
  %v146 = vadd.f32 %v104, %v126
  %v147 = vadd.f32 %v105, %v123
  %v148 = vadd.f32 %v106, %v124
  %v149 = vadd.f32 %v107, %v125
  %v150 = vadd.f32 %v108, %v126
  %v151 = vadd.f32 %v109, %v123
  %v152 = vadd.f32 %v110, %v124
  %v153 = vadd.f32 %v111, %v125
  %v154 = vadd.f32 %v112, %v126
  %v155 = vadd.f32 %v113, %v123
  %v156 = vadd.f32 %v114, %v124
  %v157 = vadd.f32 %v115, %v125
  %v158 = vadd.f32 %v116, %v126
  %v159 = vadd.f32 %v117, %v123
  %v160 = vadd.f32 %v118, %v124
  %v161 = vadd.f32 %v119, %v125
  %v162 = vadd.f32 %v120, %v126
  %163 = vst [vmem:[#allocation2] sm:$0xff] %v131
  %164 = vst [vmem:[#allocation2 + $0x8] sm:$0xff] %v132
  %165 = vst [vmem:[#allocation2 + $0x10] sm:$0xff] %v133
  %166 = vst [vmem:[#allocation2 + $0x18] sm:$0xff] %v134
  %167 = vst [vmem:[#allocation2 + $0x20] sm:$0xff] %v135
  %168 = vst [vmem:[#allocation2 + $0x28] sm:$0xff] %v136
  %169 = vst [vmem:[#allocation2 + $0x30] sm:$0xff] %v137
  %170 = vst [vmem:[#allocation2 + $0x38] sm:$0xff] %v138
  %171 = vst [vmem:[#allocation2 + $0x40] sm:$0xff] %v139
  %172 = vst [vmem:[#allocation2 + $0x48] sm:$0xff] %v140
  %173 = vst [vmem:[#allocation2 + $0x50] sm:$0xff] %v141
  %174 = vst [vmem:[#allocation2 + $0x58] sm:$0xff] %v142
  %175 = vst [vmem:[#allocation2 + $0x60] sm:$0xff] %v143
  %176 = vst [vmem:[#allocation2 + $0x68] sm:$0xff] %v144
  %177 = vst [vmem:[#allocation2 + $0x70] sm:$0xff] %v145
  %178 = vst [vmem:[#allocation2 + $0x78] sm:$0xff] %v146
  %179 = vst [vmem:[#allocation2 + $0x80] sm:$0xff] %v147
  %180 = vst [vmem:[#allocation2 + $0x88] sm:$0xff] %v148
  %181 = vst [vmem:[#allocation2 + $0x90] sm:$0xff] %v149
  %182 = vst [vmem:[#allocation2 + $0x98] sm:$0xff] %v150
  %183 = vst [vmem:[#allocation2 + $0xa0] sm:$0xff] %v151
  %184 = vst [vmem:[#allocation2 + $0xa8] sm:$0xff] %v152
  %185 = vst [vmem:[#allocation2 + $0xb0] sm:$0xff] %v153
  %186 = vst [vmem:[#allocation2 + $0xb8] sm:$0xff] %v154
  %187 = vst [vmem:[#allocation2 + $0xc0] sm:$0xff] %v155
  %188 = vst [vmem:[#allocation2 + $0xc8] sm:$0xff] %v156
  %189 = vst [vmem:[#allocation2 + $0xd0] sm:$0xff] %v157
  %190 = vst [vmem:[#allocation2 + $0xd8] sm:$0xff] %v158
  %191 = vst [vmem:[#allocation2 + $0xe0] sm:$0xff] %v159
  %192 = vst [vmem:[#allocation2 + $0xe8] sm:$0xff] %v160
  %193 = vst [vmem:[#allocation2 + $0xf0] sm:$0xff] %v161
  %194 = vst [vmem:[#allocation2 + $0xf8] sm:$0xff] %v162
  %v195 = vld [vmem:[#allocation2] sm:$0xff]
  %v196 = vld [vmem:[#allocation2 + $0x8] sm:$0xff]
  %v197 = vld [vmem:[#allocation2 + $0x10] sm:$0xff]
  %v198 = vld [vmem:[#allocation2 + $0x18] sm:$0xff]
  %v199 = vld [vmem:[%s2] sm:$0xff]
  %v200 = vld [vmem:[%s2 + $0x8] sm:$0xff]
  %v201 = vld [vmem:[%s2 + $0x10] sm:$0xff]
  %v202 = vld [vmem:[%s2 + $0x18] sm:$0xff]
  %v203 = vld [vmem:[%s2 + $0x20] sm:$0xff]
  %v204 = vld [vmem:[%s2 + $0x28] sm:$0xff]
  %v205 = vld [vmem:[%s2 + $0x30] sm:$0xff]
  %v206 = vld [vmem:[%s2 + $0x38] sm:$0xff]
  %v207 = vld [vmem:[%s2 + $0x40] sm:$0xff]
  %v208 = vld [vmem:[%s2 + $0x48] sm:$0xff]
  %v209 = vld [vmem:[%s2 + $0x50] sm:$0xff]
  %v210 = vld [vmem:[%s2 + $0x58] sm:$0xff]
  %v211 = vld [vmem:[%s2 + $0x60] sm:$0xff]
  %v212 = vld [vmem:[%s2 + $0x68] sm:$0xff]
  %v213 = vld [vmem:[%s2 + $0x70] sm:$0xff]
  %v214 = vld [vmem:[%s2 + $0x78] sm:$0xff]
  %v215 = vld [vmem:[%s2 + $0x80] sm:$0xff]
  %v216 = vld [vmem:[%s2 + $0x88] sm:$0xff]
  %v217 = vld [vmem:[%s2 + $0x90] sm:$0xff]
  %v218 = vld [vmem:[%s2 + $0x98] sm:$0xff]
  %v219 = vld [vmem:[%s2 + $0xa0] sm:$0xff]
  %v220 = vld [vmem:[%s2 + $0xa8] sm:$0xff]
  %v221 = vld [vmem:[%s2 + $0xb0] sm:$0xff]
  %v222 = vld [vmem:[%s2 + $0xb8] sm:$0xff]
  %v223 = vld [vmem:[%s2 + $0xc0] sm:$0xff]
  %v224 = vld [vmem:[%s2 + $0xc8] sm:$0xff]
  %v225 = vld [vmem:[%s2 + $0xd0] sm:$0xff]
  %v226 = vld [vmem:[%s2 + $0xd8] sm:$0xff]
  %v227 = vld [vmem:[%s2 + $0xe0] sm:$0xff]
  %v228 = vld [vmem:[%s2 + $0xe8] sm:$0xff]
  %v229 = vld [vmem:[%s2 + $0xf0] sm:$0xff]
  %v230 = vld [vmem:[%s2 + $0xf8] sm:$0xff]
  %v231 = vld [vmem:[%s2 + $0x100] sm:$0xff]
  %v232 = vld [vmem:[%s2 + $0x108] sm:$0xff]
  %v233 = vld [vmem:[%s2 + $0x110] sm:$0xff]
  %v234 = vld [vmem:[%s2 + $0x118] sm:$0xff]
  %v235 = vld [vmem:[%s2 + $0x120] sm:$0xff]
  %v236 = vld [vmem:[%s2 + $0x128] sm:$0xff]
  %v237 = vld [vmem:[%s2 + $0x130] sm:$0xff]
  %v238 = vld [vmem:[%s2 + $0x138] sm:$0xff]
  %v239 = vld [vmem:[%s2 + $0x140] sm:$0xff]
  %v240 = vld [vmem:[%s2 + $0x148] sm:$0xff]
  %v241 = vld [vmem:[%s2 + $0x150] sm:$0xff]
  %v242 = vld [vmem:[%s2 + $0x158] sm:$0xff]
  %v243 = vld [vmem:[%s2 + $0x160] sm:$0xff]
  %v244 = vld [vmem:[%s2 + $0x168] sm:$0xff]
  %v245 = vld [vmem:[%s2 + $0x170] sm:$0xff]
  %v246 = vld [vmem:[%s2 + $0x178] sm:$0xff]
  %v247 = vld [vmem:[%s2 + $0x180] sm:$0xff]
  %v248 = vld [vmem:[%s2 + $0x188] sm:$0xff]
  %v249 = vld [vmem:[%s2 + $0x190] sm:$0xff]
  %v250 = vld [vmem:[%s2 + $0x198] sm:$0xff]
  %v251 = vld [vmem:[%s2 + $0x1a0] sm:$0xff]
  %v252 = vld [vmem:[%s2 + $0x1a8] sm:$0xff]
  %v253 = vld [vmem:[%s2 + $0x1b0] sm:$0xff]
  %v254 = vld [vmem:[%s2 + $0x1b8] sm:$0xff]
  %v255 = vld [vmem:[%s2 + $0x1c0] sm:$0xff]
  %v256 = vld [vmem:[%s2 + $0x1c8] sm:$0xff]
  %v257 = vld [vmem:[%s2 + $0x1d0] sm:$0xff]
  %v258 = vld [vmem:[%s2 + $0x1d8] sm:$0xff]
  %v259 = vld [vmem:[%s2 + $0x1e0] sm:$0xff]
  %v260 = vld [vmem:[%s2 + $0x1e8] sm:$0xff]
  %v261 = vld [vmem:[%s2 + $0x1f0] sm:$0xff]
  %v262 = vld [vmem:[%s2 + $0x1f8] sm:$0xff]
  %263 = vmatpush.msra.mxu0 %v259
  %264 = vmatpush.msra.mxu0 %v255
  %265 = vmatpush.msra.mxu0 %v251
  %266 = vmatpush.msra.mxu0 %v247
  %267 = vmatpush.msra.mxu0 %v243
  %268 = vmatpush.msra.mxu0 %v239
  %269 = vmatpush.msra.mxu0 %v235
  %270 = vmatpush.msra.mxu0 %v231
  %271 = vmatpush.msra.mxu0 %v227
  %272 = vmatpush.msra.mxu0 %v223
  %273 = vmatpush.msra.mxu0 %v219
  %274 = vmatpush.msra.mxu0 %v215
  %275 = vmatpush.msra.mxu0 %v211
  %276 = vmatpush.msra.mxu0 %v207
  %277 = vmatpush.msra.mxu0 %v203
  %278 = vmatpush.msra.mxu0 %v199
  %279 = vmatmul.f32.gmra.mxu0 0.0
  %v280 = vpop.f32.mrf.mxu0
  %v281 = vadd.f32 0.0, %v280
  %282 = vdwg.mxu0
  %283 = vmatpush.msra.mxu0 %v260
  %284 = vmatpush.msra.mxu0 %v256
  %285 = vmatpush.msra.mxu0 %v252
  %286 = vmatpush.msra.mxu0 %v248
  %287 = vmatpush.msra.mxu0 %v244
  %288 = vmatpush.msra.mxu0 %v240
  %289 = vmatpush.msra.mxu0 %v236
  %290 = vmatpush.msra.mxu0 %v232
  %291 = vmatpush.msra.mxu0 %v228
  %292 = vmatpush.msra.mxu0 %v224
  %293 = vmatpush.msra.mxu0 %v220
  %294 = vmatpush.msra.mxu0 %v216
  %295 = vmatpush.msra.mxu0 %v212
  %296 = vmatpush.msra.mxu0 %v208
  %297 = vmatpush.msra.mxu0 %v204
  %298 = vmatpush.msra.mxu0 %v200
  %299 = vmatmul.f32.gmra.mxu0 0.0
  %v300 = vpop.f32.mrf.mxu0
  %v301 = vadd.f32 0.0, %v300
  %302 = vdwg.mxu0
  %303 = vmatpush.msra.mxu0 %v261
  %304 = vmatpush.msra.mxu0 %v257
  %305 = vmatpush.msra.mxu0 %v253
  %306 = vmatpush.msra.mxu0 %v249
  %307 = vmatpush.msra.mxu0 %v245
  %308 = vmatpush.msra.mxu0 %v241
  %309 = vmatpush.msra.mxu0 %v237
  %310 = vmatpush.msra.mxu0 %v233
  %311 = vmatpush.msra.mxu0 %v229
  %312 = vmatpush.msra.mxu0 %v225
  %313 = vmatpush.msra.mxu0 %v221
  %314 = vmatpush.msra.mxu0 %v217
  %315 = vmatpush.msra.mxu0 %v213
  %316 = vmatpush.msra.mxu0 %v209
  %317 = vmatpush.msra.mxu0 %v205
  %318 = vmatpush.msra.mxu0 %v201
  %319 = vmatmul.f32.gmra.mxu0 0.0
  %v320 = vpop.f32.mrf.mxu0
  %v321 = vadd.f32 0.0, %v320
  %322 = vdwg.mxu0
  %323 = vmatpush.msra.mxu0 %v262
  %324 = vmatpush.msra.mxu0 %v258
  %325 = vmatpush.msra.mxu0 %v254
  %326 = vmatpush.msra.mxu0 %v250
  %327 = vmatpush.msra.mxu0 %v246
  %328 = vmatpush.msra.mxu0 %v242
  %329 = vmatpush.msra.mxu0 %v238
  %330 = vmatpush.msra.mxu0 %v234
  %331 = vmatpush.msra.mxu0 %v230
  %332 = vmatpush.msra.mxu0 %v226
  %333 = vmatpush.msra.mxu0 %v222
  %334 = vmatpush.msra.mxu0 %v218
  %335 = vmatpush.msra.mxu0 %v214
  %336 = vmatpush.msra.mxu0 %v210
  %337 = vmatpush.msra.mxu0 %v206
  %338 = vmatpush.msra.mxu0 %v202
  %339 = vmatmul.f32.gmra.mxu0 0.0
  %v340 = vpop.f32.mrf.mxu0
  %v341 = vadd.f32 0.0, %v340
  %342 = vdwg.mxu0
  %v343 = vadd.f32 %v195, %v281
  %v344 = vadd.f32 %v196, %v301
  %v345 = vadd.f32 %v197, %v321
  %v346 = vadd.f32 %v198, %v341
  %v347 = vxor.u32 %v343, 2147483648
  %v348 = vmul.f32 %v347, 1.442695
  %v349 = vpow.pop %v348
  %v350 = vadd.f32 %v349, 1.0
  %v351 = vrcp.pop %v350
  %v352 = vmul.f32 %v350, %v351
  %v353 = vsub.f32 1.0, %v352
  %v354 = vmul.f32 %v351, %v353
  %v355 = vadd.f32 %v351, %v354
  %vm356 = vweird.f32 %v350
  %vm357 = vweird.f32 %v351
  %vm358 = vmor %vm356, %vm357
  %v359 = vsel %vm358, %v351, %v355
  %v360 = vand.u32 2147483647, %v350
  %vm361 = vcmp.eq.f32.partialorder %v360, 8.507059e+37
  %v362 = vand.u32 %v350, 2147483648
  %v363 = vor.u32 1.1754944e-38, %v362
  %v364 = vsel %vm361, %v363, %v359
  %v365 = vmul.f32 1.0, %v364
  %v366 = vxor.u32 %v344, 2147483648
  %v367 = vmul.f32 %v366, 1.442695
  %v368 = vpow.pop %v367
  %v369 = vadd.f32 %v368, 1.0
  %v370 = vrcp.pop %v369
  %v371 = vmul.f32 %v369, %v370
  %v372 = vsub.f32 1.0, %v371
  %v373 = vmul.f32 %v370, %v372
  %v374 = vadd.f32 %v370, %v373
  %vm375 = vweird.f32 %v369
  %vm376 = vweird.f32 %v370
  %vm377 = vmor %vm375, %vm376
  %v378 = vsel %vm377, %v370, %v374
  %v379 = vand.u32 2147483647, %v369
  %vm380 = vcmp.eq.f32.partialorder %v379, 8.507059e+37
  %v381 = vand.u32 %v369, 2147483648
  %v382 = vor.u32 1.1754944e-38, %v381
  %v383 = vsel %vm380, %v382, %v378
  %v384 = vmul.f32 1.0, %v383
  %v385 = vtanh.pop %v345
  %v386 = vxor.u32 %v346, 2147483648
  %v387 = vmul.f32 %v386, 1.442695
  %v388 = vpow.pop %v387
  %v389 = vadd.f32 %v388, 1.0
  %v390 = vrcp.pop %v389
  %v391 = vmul.f32 %v389, %v390
  %v392 = vsub.f32 1.0, %v391
  %v393 = vmul.f32 %v390, %v392
  %v394 = vadd.f32 %v390, %v393
  %vm395 = vweird.f32 %v389
  %vm396 = vweird.f32 %v390
  %vm397 = vmor %vm395, %vm396
  %v398 = vsel %vm397, %v390, %v394
  %v399 = vand.u32 2147483647, %v389
  %vm400 = vcmp.eq.f32.partialorder %v399, 8.507059e+37
  %v401 = vand.u32 %v389, 2147483648
  %v402 = vor.u32 1.1754944e-38, %v401
  %v403 = vsel %vm400, %v402, %v398
  %v404 = vmul.f32 1.0, %v403
  %v405 = vmul.f32 %v384, 0.0
  %v406 = vmul.f32 %v365, %v385
  %v407 = vadd.f32 %v405, %v406
  %v408 = vtanh.pop %v407
  %v409 = vmul.f32 %v404, %v408
  %v410 = vld [vmem:[#allocation2 + $0x20] sm:$0xff]
  %v411 = vld [vmem:[#allocation2 + $0x28] sm:$0xff]
  %v412 = vld [vmem:[#allocation2 + $0x30] sm:$0xff]
  %v413 = vld [vmem:[#allocation2 + $0x38] sm:$0xff]
  %414 = vmatpush.msra.mxu0 %v259
  %415 = vmatpush.msra.mxu0 %v255
  %416 = vmatpush.msra.mxu0 %v251
  %417 = vmatpush.msra.mxu0 %v247
  %418 = vmatpush.msra.mxu0 %v243
  %419 = vmatpush.msra.mxu0 %v239
  %420 = vmatpush.msra.mxu0 %v235
  %421 = vmatpush.msra.mxu0 %v231
  %422 = vmatpush.msra.mxu0 %v227
  %423 = vmatpush.msra.mxu0 %v223
  %424 = vmatpush.msra.mxu0 %v219
  %425 = vmatpush.msra.mxu0 %v215
  %426 = vmatpush.msra.mxu0 %v211
  %427 = vmatpush.msra.mxu0 %v207
  %428 = vmatpush.msra.mxu0 %v203
  %429 = vmatpush.msra.mxu0 %v199
  %430 = vmatmul.f32.gmra.mxu0 %v409
  %v431 = vpop.f32.mrf.mxu0
  %v432 = vadd.f32 0.0, %v431
  %433 = vdwg.mxu0
  %434 = vmatpush.msra.mxu0 %v260
  %435 = vmatpush.msra.mxu0 %v256
  %436 = vmatpush.msra.mxu0 %v252
  %437 = vmatpush.msra.mxu0 %v248
  %438 = vmatpush.msra.mxu0 %v244
  %439 = vmatpush.msra.mxu0 %v240
  %440 = vmatpush.msra.mxu0 %v236
  %441 = vmatpush.msra.mxu0 %v232
  %442 = vmatpush.msra.mxu0 %v228
  %443 = vmatpush.msra.mxu0 %v224
  %444 = vmatpush.msra.mxu0 %v220
  %445 = vmatpush.msra.mxu0 %v216
  %446 = vmatpush.msra.mxu0 %v212
  %447 = vmatpush.msra.mxu0 %v208
  %448 = vmatpush.msra.mxu0 %v204
  %449 = vmatpush.msra.mxu0 %v200
  %450 = vmatmul.f32.gmra.mxu0 %v409
  %v451 = vpop.f32.mrf.mxu0
  %v452 = vadd.f32 0.0, %v451
  %453 = vdwg.mxu0
  %454 = vmatpush.msra.mxu0 %v261
  %455 = vmatpush.msra.mxu0 %v257
  %456 = vmatpush.msra.mxu0 %v253
  %457 = vmatpush.msra.mxu0 %v249
  %458 = vmatpush.msra.mxu0 %v245
  %459 = vmatpush.msra.mxu0 %v241
  %460 = vmatpush.msra.mxu0 %v237
  %461 = vmatpush.msra.mxu0 %v233
  %462 = vmatpush.msra.mxu0 %v229
  %463 = vmatpush.msra.mxu0 %v225
  %464 = vmatpush.msra.mxu0 %v221
  %465 = vmatpush.msra.mxu0 %v217
  %466 = vmatpush.msra.mxu0 %v213
  %467 = vmatpush.msra.mxu0 %v209
  %468 = vmatpush.msra.mxu0 %v205
  %469 = vmatpush.msra.mxu0 %v201
  %470 = vmatmul.f32.gmra.mxu0 %v409
  %v471 = vpop.f32.mrf.mxu0
  %v472 = vadd.f32 0.0, %v471
  %473 = vdwg.mxu0
  %474 = vmatpush.msra.mxu0 %v262
  %475 = vmatpush.msra.mxu0 %v258
  %476 = vmatpush.msra.mxu0 %v254
  %477 = vmatpush.msra.mxu0 %v250
  %478 = vmatpush.msra.mxu0 %v246
  %479 = vmatpush.msra.mxu0 %v242
  %480 = vmatpush.msra.mxu0 %v238
  %481 = vmatpush.msra.mxu0 %v234
  %482 = vmatpush.msra.mxu0 %v230
  %483 = vmatpush.msra.mxu0 %v226
  %484 = vmatpush.msra.mxu0 %v222
  %485 = vmatpush.msra.mxu0 %v218
  %486 = vmatpush.msra.mxu0 %v214
  %487 = vmatpush.msra.mxu0 %v210
  %488 = vmatpush.msra.mxu0 %v206
  %489 = vmatpush.msra.mxu0 %v202
  %490 = vmatmul.f32.gmra.mxu0 %v409
  %v491 = vpop.f32.mrf.mxu0
  %v492 = vadd.f32 0.0, %v491
  %493 = vdwg.mxu0
  %v494 = vadd.f32 %v410, %v432
  %v495 = vadd.f32 %v411, %v452
  %v496 = vadd.f32 %v412, %v472
  %v497 = vadd.f32 %v413, %v492
  %v498 = vxor.u32 %v494, 2147483648
  %v499 = vmul.f32 %v498, 1.442695
  %v500 = vpow.pop %v499
  %v501 = vadd.f32 %v500, 1.0
  %v502 = vrcp.pop %v501
  %v503 = vmul.f32 %v501, %v502
  %v504 = vsub.f32 1.0, %v503
  %v505 = vmul.f32 %v502, %v504
  %v506 = vadd.f32 %v502, %v505
  %vm507 = vweird.f32 %v501
  %vm508 = vweird.f32 %v502
  %vm509 = vmor %vm507, %vm508
  %v510 = vsel %vm509, %v502, %v506
  %v511 = vand.u32 2147483647, %v501
  %vm512 = vcmp.eq.f32.partialorder %v511, 8.507059e+37
  %v513 = vand.u32 %v501, 2147483648
  %v514 = vor.u32 1.1754944e-38, %v513
  %v515 = vsel %vm512, %v514, %v510
  %v516 = vmul.f32 1.0, %v515
  %v517 = vxor.u32 %v495, 2147483648
  %v518 = vmul.f32 %v517, 1.442695
  %v519 = vpow.pop %v518
  %v520 = vadd.f32 %v519, 1.0
  %v521 = vrcp.pop %v520
  %v522 = vmul.f32 %v520, %v521
  %v523 = vsub.f32 1.0, %v522
  %v524 = vmul.f32 %v521, %v523
  %v525 = vadd.f32 %v521, %v524
  %vm526 = vweird.f32 %v520
  %vm527 = vweird.f32 %v521
  %vm528 = vmor %vm526, %vm527
  %v529 = vsel %vm528, %v521, %v525
  %v530 = vand.u32 2147483647, %v520
  %vm531 = vcmp.eq.f32.partialorder %v530, 8.507059e+37
  %v532 = vand.u32 %v520, 2147483648
  %v533 = vor.u32 1.1754944e-38, %v532
  %v534 = vsel %vm531, %v533, %v529
  %v535 = vmul.f32 1.0, %v534
  %v536 = vtanh.pop %v496
  %v537 = vxor.u32 %v497, 2147483648
  %v538 = vmul.f32 %v537, 1.442695
  %v539 = vpow.pop %v538
  %v540 = vadd.f32 %v539, 1.0
  %v541 = vrcp.pop %v540
  %v542 = vmul.f32 %v540, %v541
  %v543 = vsub.f32 1.0, %v542
  %v544 = vmul.f32 %v541, %v543
  %v545 = vadd.f32 %v541, %v544
  %vm546 = vweird.f32 %v540
  %vm547 = vweird.f32 %v541
  %vm548 = vmor %vm546, %vm547
  %v549 = vsel %vm548, %v541, %v545
  %v550 = vand.u32 2147483647, %v540
  %vm551 = vcmp.eq.f32.partialorder %v550, 8.507059e+37
  %v552 = vand.u32 %v540, 2147483648
  %v553 = vor.u32 1.1754944e-38, %v552
  %v554 = vsel %vm551, %v553, %v549
  %v555 = vmul.f32 1.0, %v554
  %v556 = vmul.f32 %v535, %v407
  %v557 = vmul.f32 %v516, %v536
  %v558 = vadd.f32 %v556, %v557
  %v559 = vtanh.pop %v558
  %v560 = vmul.f32 %v555, %v559
  %v561 = vld [vmem:[#allocation2 + $0x40] sm:$0xff]
  %v562 = vld [vmem:[#allocation2 + $0x48] sm:$0xff]
  %v563 = vld [vmem:[#allocation2 + $0x50] sm:$0xff]
  %v564 = vld [vmem:[#allocation2 + $0x58] sm:$0xff]
  %565 = vmatpush.msra.mxu0 %v259
  %566 = vmatpush.msra.mxu0 %v255
  %567 = vmatpush.msra.mxu0 %v251
  %568 = vmatpush.msra.mxu0 %v247
  %569 = vmatpush.msra.mxu0 %v243
  %570 = vmatpush.msra.mxu0 %v239
  %571 = vmatpush.msra.mxu0 %v235
  %572 = vmatpush.msra.mxu0 %v231
  %573 = vmatpush.msra.mxu0 %v227
  %574 = vmatpush.msra.mxu0 %v223
  %575 = vmatpush.msra.mxu0 %v219
  %576 = vmatpush.msra.mxu0 %v215
  %577 = vmatpush.msra.mxu0 %v211
  %578 = vmatpush.msra.mxu0 %v207
  %579 = vmatpush.msra.mxu0 %v203
  %580 = vmatpush.msra.mxu0 %v199
  %581 = vmatmul.f32.gmra.mxu0 %v560
  %v582 = vpop.f32.mrf.mxu0
  %v583 = vadd.f32 0.0, %v582
  %584 = vdwg.mxu0
  %585 = vmatpush.msra.mxu0 %v260
  %586 = vmatpush.msra.mxu0 %v256
  %587 = vmatpush.msra.mxu0 %v252
  %588 = vmatpush.msra.mxu0 %v248
  %589 = vmatpush.msra.mxu0 %v244
  %590 = vmatpush.msra.mxu0 %v240
  %591 = vmatpush.msra.mxu0 %v236
  %592 = vmatpush.msra.mxu0 %v232
  %593 = vmatpush.msra.mxu0 %v228
  %594 = vmatpush.msra.mxu0 %v224
  %595 = vmatpush.msra.mxu0 %v220
  %596 = vmatpush.msra.mxu0 %v216
  %597 = vmatpush.msra.mxu0 %v212
  %598 = vmatpush.msra.mxu0 %v208
  %599 = vmatpush.msra.mxu0 %v204
  %600 = vmatpush.msra.mxu0 %v200
  %601 = vmatmul.f32.gmra.mxu0 %v560
  %v602 = vpop.f32.mrf.mxu0
  %v603 = vadd.f32 0.0, %v602
  %604 = vdwg.mxu0
  %605 = vmatpush.msra.mxu0 %v261
  %606 = vmatpush.msra.mxu0 %v257
  %607 = vmatpush.msra.mxu0 %v253
  %608 = vmatpush.msra.mxu0 %v249
  %609 = vmatpush.msra.mxu0 %v245
  %610 = vmatpush.msra.mxu0 %v241
  %611 = vmatpush.msra.mxu0 %v237
  %612 = vmatpush.msra.mxu0 %v233
  %613 = vmatpush.msra.mxu0 %v229
  %614 = vmatpush.msra.mxu0 %v225
  %615 = vmatpush.msra.mxu0 %v221
  %616 = vmatpush.msra.mxu0 %v217
  %617 = vmatpush.msra.mxu0 %v213
  %618 = vmatpush.msra.mxu0 %v209
  %619 = vmatpush.msra.mxu0 %v205
  %620 = vmatpush.msra.mxu0 %v201
  %621 = vmatmul.f32.gmra.mxu0 %v560
  %v622 = vpop.f32.mrf.mxu0
  %v623 = vadd.f32 0.0, %v622
  %624 = vdwg.mxu0
  %625 = vmatpush.msra.mxu0 %v262
  %626 = vmatpush.msra.mxu0 %v258
  %627 = vmatpush.msra.mxu0 %v254
  %628 = vmatpush.msra.mxu0 %v250
  %629 = vmatpush.msra.mxu0 %v246
  %630 = vmatpush.msra.mxu0 %v242
  %631 = vmatpush.msra.mxu0 %v238
  %632 = vmatpush.msra.mxu0 %v234
  %633 = vmatpush.msra.mxu0 %v230
  %634 = vmatpush.msra.mxu0 %v226
  %635 = vmatpush.msra.mxu0 %v222
  %636 = vmatpush.msra.mxu0 %v218
  %637 = vmatpush.msra.mxu0 %v214
  %638 = vmatpush.msra.mxu0 %v210
  %639 = vmatpush.msra.mxu0 %v206
  %640 = vmatpush.msra.mxu0 %v202
  %641 = vmatmul.f32.gmra.mxu0 %v560
  %v642 = vpop.f32.mrf.mxu0
  %v643 = vadd.f32 0.0, %v642
  %644 = vdwg.mxu0
  %v645 = vadd.f32 %v561, %v583
  %v646 = vadd.f32 %v562, %v603
  %v647 = vadd.f32 %v563, %v623
  %v648 = vadd.f32 %v564, %v643
  %v649 = vxor.u32 %v645, 2147483648
  %v650 = vmul.f32 %v649, 1.442695
  %v651 = vpow.pop %v650
  %v652 = vadd.f32 %v651, 1.0
  %v653 = vrcp.pop %v652
  %v654 = vmul.f32 %v652, %v653
  %v655 = vsub.f32 1.0, %v654
  %v656 = vmul.f32 %v653, %v655
  %v657 = vadd.f32 %v653, %v656
  %vm658 = vweird.f32 %v652
  %vm659 = vweird.f32 %v653
  %vm660 = vmor %vm658, %vm659
  %v661 = vsel %vm660, %v653, %v657
  %v662 = vand.u32 2147483647, %v652
  %vm663 = vcmp.eq.f32.partialorder %v662, 8.507059e+37
  %v664 = vand.u32 %v652, 2147483648
  %v665 = vor.u32 1.1754944e-38, %v664
  %v666 = vsel %vm663, %v665, %v661
  %v667 = vmul.f32 1.0, %v666
  %v668 = vxor.u32 %v646, 2147483648
  %v669 = vmul.f32 %v668, 1.442695
  %v670 = vpow.pop %v669
  %v671 = vadd.f32 %v670, 1.0
  %v672 = vrcp.pop %v671
  %v673 = vmul.f32 %v671, %v672
  %v674 = vsub.f32 1.0, %v673
  %v675 = vmul.f32 %v672, %v674
  %v676 = vadd.f32 %v672, %v675
  %vm677 = vweird.f32 %v671
  %vm678 = vweird.f32 %v672
  %vm679 = vmor %vm677, %vm678
  %v680 = vsel %vm679, %v672, %v676
  %v681 = vand.u32 2147483647, %v671
  %vm682 = vcmp.eq.f32.partialorder %v681, 8.507059e+37
  %v683 = vand.u32 %v671, 2147483648
  %v684 = vor.u32 1.1754944e-38, %v683
  %v685 = vsel %vm682, %v684, %v680
  %v686 = vmul.f32 1.0, %v685
  %v687 = vtanh.pop %v647
  %v688 = vxor.u32 %v648, 2147483648
  %v689 = vmul.f32 %v688, 1.442695
  %v690 = vpow.pop %v689
  %v691 = vadd.f32 %v690, 1.0
  %v692 = vrcp.pop %v691
  %v693 = vmul.f32 %v691, %v692
  %v694 = vsub.f32 1.0, %v693
  %v695 = vmul.f32 %v692, %v694
  %v696 = vadd.f32 %v692, %v695
  %vm697 = vweird.f32 %v691
  %vm698 = vweird.f32 %v692
  %vm699 = vmor %vm697, %vm698
  %v700 = vsel %vm699, %v692, %v696
  %v701 = vand.u32 2147483647, %v691
  %vm702 = vcmp.eq.f32.partialorder %v701, 8.507059e+37
  %v703 = vand.u32 %v691, 2147483648
  %v704 = vor.u32 1.1754944e-38, %v703
  %v705 = vsel %vm702, %v704, %v700
  %v706 = vmul.f32 1.0, %v705
  %v707 = vmul.f32 %v686, %v558
  %v708 = vmul.f32 %v667, %v687
  %v709 = vadd.f32 %v707, %v708
  %v710 = vtanh.pop %v709
  %v711 = vmul.f32 %v706, %v710
  %v712 = vld [vmem:[#allocation2 + $0x60] sm:$0xff]
  %v713 = vld [vmem:[#allocation2 + $0x68] sm:$0xff]
  %v714 = vld [vmem:[#allocation2 + $0x70] sm:$0xff]
  %v715 = vld [vmem:[#allocation2 + $0x78] sm:$0xff]
  %716 = vmatpush.msra.mxu0 %v259
  %717 = vmatpush.msra.mxu0 %v255
  %718 = vmatpush.msra.mxu0 %v251
  %719 = vmatpush.msra.mxu0 %v247
  %720 = vmatpush.msra.mxu0 %v243
  %721 = vmatpush.msra.mxu0 %v239
  %722 = vmatpush.msra.mxu0 %v235
  %723 = vmatpush.msra.mxu0 %v231
  %724 = vmatpush.msra.mxu0 %v227
  %725 = vmatpush.msra.mxu0 %v223
  %726 = vmatpush.msra.mxu0 %v219
  %727 = vmatpush.msra.mxu0 %v215
  %728 = vmatpush.msra.mxu0 %v211
  %729 = vmatpush.msra.mxu0 %v207
  %730 = vmatpush.msra.mxu0 %v203
  %731 = vmatpush.msra.mxu0 %v199
  %732 = vmatmul.f32.gmra.mxu0 %v711
  %v733 = vpop.f32.mrf.mxu0
  %v734 = vadd.f32 0.0, %v733
  %735 = vdwg.mxu0
  %736 = vmatpush.msra.mxu0 %v260
  %737 = vmatpush.msra.mxu0 %v256
  %738 = vmatpush.msra.mxu0 %v252
  %739 = vmatpush.msra.mxu0 %v248
  %740 = vmatpush.msra.mxu0 %v244
  %741 = vmatpush.msra.mxu0 %v240
  %742 = vmatpush.msra.mxu0 %v236
  %743 = vmatpush.msra.mxu0 %v232
  %744 = vmatpush.msra.mxu0 %v228
  %745 = vmatpush.msra.mxu0 %v224
  %746 = vmatpush.msra.mxu0 %v220
  %747 = vmatpush.msra.mxu0 %v216
  %748 = vmatpush.msra.mxu0 %v212
  %749 = vmatpush.msra.mxu0 %v208
  %750 = vmatpush.msra.mxu0 %v204
  %751 = vmatpush.msra.mxu0 %v200
  %752 = vmatmul.f32.gmra.mxu0 %v711
  %v753 = vpop.f32.mrf.mxu0
  %v754 = vadd.f32 0.0, %v753
  %755 = vdwg.mxu0
  %756 = vmatpush.msra.mxu0 %v261
  %757 = vmatpush.msra.mxu0 %v257
  %758 = vmatpush.msra.mxu0 %v253
  %759 = vmatpush.msra.mxu0 %v249
  %760 = vmatpush.msra.mxu0 %v245
  %761 = vmatpush.msra.mxu0 %v241
  %762 = vmatpush.msra.mxu0 %v237
  %763 = vmatpush.msra.mxu0 %v233
  %764 = vmatpush.msra.mxu0 %v229
  %765 = vmatpush.msra.mxu0 %v225
  %766 = vmatpush.msra.mxu0 %v221
  %767 = vmatpush.msra.mxu0 %v217
  %768 = vmatpush.msra.mxu0 %v213
  %769 = vmatpush.msra.mxu0 %v209
  %770 = vmatpush.msra.mxu0 %v205
  %771 = vmatpush.msra.mxu0 %v201
  %772 = vmatmul.f32.gmra.mxu0 %v711
  %v773 = vpop.f32.mrf.mxu0
  %v774 = vadd.f32 0.0, %v773
  %775 = vdwg.mxu0
  %776 = vmatpush.msra.mxu0 %v262
  %777 = vmatpush.msra.mxu0 %v258
  %778 = vmatpush.msra.mxu0 %v254
  %779 = vmatpush.msra.mxu0 %v250
  %780 = vmatpush.msra.mxu0 %v246
  %781 = vmatpush.msra.mxu0 %v242
  %782 = vmatpush.msra.mxu0 %v238
  %783 = vmatpush.msra.mxu0 %v234
  %784 = vmatpush.msra.mxu0 %v230
  %785 = vmatpush.msra.mxu0 %v226
  %786 = vmatpush.msra.mxu0 %v222
  %787 = vmatpush.msra.mxu0 %v218
  %788 = vmatpush.msra.mxu0 %v214
  %789 = vmatpush.msra.mxu0 %v210
  %790 = vmatpush.msra.mxu0 %v206
  %791 = vmatpush.msra.mxu0 %v202
  %792 = vmatmul.f32.gmra.mxu0 %v711
  %v793 = vpop.f32.mrf.mxu0
  %v794 = vadd.f32 0.0, %v793
  %795 = vdwg.mxu0
  %v796 = vadd.f32 %v712, %v734
  %v797 = vadd.f32 %v713, %v754
  %v798 = vadd.f32 %v714, %v774
  %v799 = vadd.f32 %v715, %v794
  %v800 = vxor.u32 %v796, 2147483648
  %v801 = vmul.f32 %v800, 1.442695
  %v802 = vpow.pop %v801
  %v803 = vadd.f32 %v802, 1.0
  %v804 = vrcp.pop %v803
  %v805 = vmul.f32 %v803, %v804
  %v806 = vsub.f32 1.0, %v805
  %v807 = vmul.f32 %v804, %v806
  %v808 = vadd.f32 %v804, %v807
  %vm809 = vweird.f32 %v803
  %vm810 = vweird.f32 %v804
  %vm811 = vmor %vm809, %vm810
  %v812 = vsel %vm811, %v804, %v808
  %v813 = vand.u32 2147483647, %v803
  %vm814 = vcmp.eq.f32.partialorder %v813, 8.507059e+37
  %v815 = vand.u32 %v803, 2147483648
  %v816 = vor.u32 1.1754944e-38, %v815
  %v817 = vsel %vm814, %v816, %v812
  %v818 = vmul.f32 1.0, %v817
  %v819 = vxor.u32 %v797, 2147483648
  %v820 = vmul.f32 %v819, 1.442695
  %v821 = vpow.pop %v820
  %v822 = vadd.f32 %v821, 1.0
  %v823 = vrcp.pop %v822
  %v824 = vmul.f32 %v822, %v823
  %v825 = vsub.f32 1.0, %v824
  %v826 = vmul.f32 %v823, %v825
  %v827 = vadd.f32 %v823, %v826
  %vm828 = vweird.f32 %v822
  %vm829 = vweird.f32 %v823
  %vm830 = vmor %vm828, %vm829
  %v831 = vsel %vm830, %v823, %v827
  %v832 = vand.u32 2147483647, %v822
  %vm833 = vcmp.eq.f32.partialorder %v832, 8.507059e+37
  %v834 = vand.u32 %v822, 2147483648
  %v835 = vor.u32 1.1754944e-38, %v834
  %v836 = vsel %vm833, %v835, %v831
  %v837 = vmul.f32 1.0, %v836
  %v838 = vtanh.pop %v798
  %v839 = vxor.u32 %v799, 2147483648
  %v840 = vmul.f32 %v839, 1.442695
  %v841 = vpow.pop %v840
  %v842 = vadd.f32 %v841, 1.0
  %v843 = vrcp.pop %v842
  %v844 = vmul.f32 %v842, %v843
  %v845 = vsub.f32 1.0, %v844
  %v846 = vmul.f32 %v843, %v845
  %v847 = vadd.f32 %v843, %v846
  %vm848 = vweird.f32 %v842
  %vm849 = vweird.f32 %v843
  %vm850 = vmor %vm848, %vm849
  %v851 = vsel %vm850, %v843, %v847
  %v852 = vand.u32 2147483647, %v842
  %vm853 = vcmp.eq.f32.partialorder %v852, 8.507059e+37
  %v854 = vand.u32 %v842, 2147483648
  %v855 = vor.u32 1.1754944e-38, %v854
  %v856 = vsel %vm853, %v855, %v851
  %v857 = vmul.f32 1.0, %v856
  %v858 = vmul.f32 %v837, %v709
  %v859 = vmul.f32 %v818, %v838
  %v860 = vadd.f32 %v858, %v859
  %v861 = vtanh.pop %v860
  %v862 = vmul.f32 %v857, %v861
  %v863 = vld [vmem:[#allocation2 + $0x80] sm:$0xff]
  %v864 = vld [vmem:[#allocation2 + $0x88] sm:$0xff]
  %v865 = vld [vmem:[#allocation2 + $0x90] sm:$0xff]
  %v866 = vld [vmem:[#allocation2 + $0x98] sm:$0xff]
  %867 = vmatpush.msra.mxu0 %v259
  %868 = vmatpush.msra.mxu0 %v255
  %869 = vmatpush.msra.mxu0 %v251
  %870 = vmatpush.msra.mxu0 %v247
  %871 = vmatpush.msra.mxu0 %v243
  %872 = vmatpush.msra.mxu0 %v239
  %873 = vmatpush.msra.mxu0 %v235
  %874 = vmatpush.msra.mxu0 %v231
  %875 = vmatpush.msra.mxu0 %v227
  %876 = vmatpush.msra.mxu0 %v223
  %877 = vmatpush.msra.mxu0 %v219
  %878 = vmatpush.msra.mxu0 %v215
  %879 = vmatpush.msra.mxu0 %v211
  %880 = vmatpush.msra.mxu0 %v207
  %881 = vmatpush.msra.mxu0 %v203
  %882 = vmatpush.msra.mxu0 %v199
  %883 = vmatmul.f32.gmra.mxu0 %v862
  %v884 = vpop.f32.mrf.mxu0
  %v885 = vadd.f32 0.0, %v884
  %886 = vdwg.mxu0
  %887 = vmatpush.msra.mxu0 %v260
  %888 = vmatpush.msra.mxu0 %v256
  %889 = vmatpush.msra.mxu0 %v252
  %890 = vmatpush.msra.mxu0 %v248
  %891 = vmatpush.msra.mxu0 %v244
  %892 = vmatpush.msra.mxu0 %v240
  %893 = vmatpush.msra.mxu0 %v236
  %894 = vmatpush.msra.mxu0 %v232
  %895 = vmatpush.msra.mxu0 %v228
  %896 = vmatpush.msra.mxu0 %v224
  %897 = vmatpush.msra.mxu0 %v220
  %898 = vmatpush.msra.mxu0 %v216
  %899 = vmatpush.msra.mxu0 %v212
  %900 = vmatpush.msra.mxu0 %v208
  %901 = vmatpush.msra.mxu0 %v204
  %902 = vmatpush.msra.mxu0 %v200
  %903 = vmatmul.f32.gmra.mxu0 %v862
  %v904 = vpop.f32.mrf.mxu0
  %v905 = vadd.f32 0.0, %v904
  %906 = vdwg.mxu0
  %907 = vmatpush.msra.mxu0 %v261
  %908 = vmatpush.msra.mxu0 %v257
  %909 = vmatpush.msra.mxu0 %v253
  %910 = vmatpush.msra.mxu0 %v249
  %911 = vmatpush.msra.mxu0 %v245
  %912 = vmatpush.msra.mxu0 %v241
  %913 = vmatpush.msra.mxu0 %v237
  %914 = vmatpush.msra.mxu0 %v233
  %915 = vmatpush.msra.mxu0 %v229
  %916 = vmatpush.msra.mxu0 %v225
  %917 = vmatpush.msra.mxu0 %v221
  %918 = vmatpush.msra.mxu0 %v217
  %919 = vmatpush.msra.mxu0 %v213
  %920 = vmatpush.msra.mxu0 %v209
  %921 = vmatpush.msra.mxu0 %v205
  %922 = vmatpush.msra.mxu0 %v201
  %923 = vmatmul.f32.gmra.mxu0 %v862
  %v924 = vpop.f32.mrf.mxu0
  %v925 = vadd.f32 0.0, %v924
  %926 = vdwg.mxu0
  %927 = vmatpush.msra.mxu0 %v262
  %928 = vmatpush.msra.mxu0 %v258
  %929 = vmatpush.msra.mxu0 %v254
  %930 = vmatpush.msra.mxu0 %v250
  %931 = vmatpush.msra.mxu0 %v246
  %932 = vmatpush.msra.mxu0 %v242
  %933 = vmatpush.msra.mxu0 %v238
  %934 = vmatpush.msra.mxu0 %v234
  %935 = vmatpush.msra.mxu0 %v230
  %936 = vmatpush.msra.mxu0 %v226
  %937 = vmatpush.msra.mxu0 %v222
  %938 = vmatpush.msra.mxu0 %v218
  %939 = vmatpush.msra.mxu0 %v214
  %940 = vmatpush.msra.mxu0 %v210
  %941 = vmatpush.msra.mxu0 %v206
  %942 = vmatpush.msra.mxu0 %v202
  %943 = vmatmul.f32.gmra.mxu0 %v862
  %v944 = vpop.f32.mrf.mxu0
  %v945 = vadd.f32 0.0, %v944
  %946 = vdwg.mxu0
  %v947 = vadd.f32 %v863, %v885
  %v948 = vadd.f32 %v864, %v905
  %v949 = vadd.f32 %v865, %v925
  %v950 = vadd.f32 %v866, %v945
  %v951 = vxor.u32 %v947, 2147483648
  %v952 = vmul.f32 %v951, 1.442695
  %v953 = vpow.pop %v952
  %v954 = vadd.f32 %v953, 1.0
  %v955 = vrcp.pop %v954
  %v956 = vmul.f32 %v954, %v955
  %v957 = vsub.f32 1.0, %v956
  %v958 = vmul.f32 %v955, %v957
  %v959 = vadd.f32 %v955, %v958
  %vm960 = vweird.f32 %v954
  %vm961 = vweird.f32 %v955
  %vm962 = vmor %vm960, %vm961
  %v963 = vsel %vm962, %v955, %v959
  %v964 = vand.u32 2147483647, %v954
  %vm965 = vcmp.eq.f32.partialorder %v964, 8.507059e+37
  %v966 = vand.u32 %v954, 2147483648
  %v967 = vor.u32 1.1754944e-38, %v966
  %v968 = vsel %vm965, %v967, %v963
  %v969 = vmul.f32 1.0, %v968
  %v970 = vxor.u32 %v948, 2147483648
  %v971 = vmul.f32 %v970, 1.442695
  %v972 = vpow.pop %v971
  %v973 = vadd.f32 %v972, 1.0
  %v974 = vrcp.pop %v973
  %v975 = vmul.f32 %v973, %v974
  %v976 = vsub.f32 1.0, %v975
  %v977 = vmul.f32 %v974, %v976
  %v978 = vadd.f32 %v974, %v977
  %vm979 = vweird.f32 %v973
  %vm980 = vweird.f32 %v974
  %vm981 = vmor %vm979, %vm980
  %v982 = vsel %vm981, %v974, %v978
  %v983 = vand.u32 2147483647, %v973
  %vm984 = vcmp.eq.f32.partialorder %v983, 8.507059e+37
  %v985 = vand.u32 %v973, 2147483648
  %v986 = vor.u32 1.1754944e-38, %v985
  %v987 = vsel %vm984, %v986, %v982
  %v988 = vmul.f32 1.0, %v987
  %v989 = vtanh.pop %v949
  %v990 = vxor.u32 %v950, 2147483648
  %v991 = vmul.f32 %v990, 1.442695
  %v992 = vpow.pop %v991
  %v993 = vadd.f32 %v992, 1.0
  %v994 = vrcp.pop %v993
  %v995 = vmul.f32 %v993, %v994
  %v996 = vsub.f32 1.0, %v995
  %v997 = vmul.f32 %v994, %v996
  %v998 = vadd.f32 %v994, %v997
  %vm999 = vweird.f32 %v993
  %vm1000 = vweird.f32 %v994
  %vm1001 = vmor %vm999, %vm1000
  %v1002 = vsel %vm1001, %v994, %v998
  %v1003 = vand.u32 2147483647, %v993
  %vm1004 = vcmp.eq.f32.partialorder %v1003, 8.507059e+37
  %v1005 = vand.u32 %v993, 2147483648
  %v1006 = vor.u32 1.1754944e-38, %v1005
  %v1007 = vsel %vm1004, %v1006, %v1002
  %v1008 = vmul.f32 1.0, %v1007
  %v1009 = vmul.f32 %v988, %v860
  %v1010 = vmul.f32 %v969, %v989
  %v1011 = vadd.f32 %v1009, %v1010
  %v1012 = vtanh.pop %v1011
  %v1013 = vmul.f32 %v1008, %v1012
  %v1014 = vld [vmem:[#allocation2 + $0xa0] sm:$0xff]
  %v1015 = vld [vmem:[#allocation2 + $0xa8] sm:$0xff]
  %v1016 = vld [vmem:[#allocation2 + $0xb0] sm:$0xff]
  %v1017 = vld [vmem:[#allocation2 + $0xb8] sm:$0xff]
  %1018 = vmatpush.msra.mxu0 %v259
  %1019 = vmatpush.msra.mxu0 %v255
  %1020 = vmatpush.msra.mxu0 %v251
  %1021 = vmatpush.msra.mxu0 %v247
  %1022 = vmatpush.msra.mxu0 %v243
  %1023 = vmatpush.msra.mxu0 %v239
  %1024 = vmatpush.msra.mxu0 %v235
  %1025 = vmatpush.msra.mxu0 %v231
  %1026 = vmatpush.msra.mxu0 %v227
  %1027 = vmatpush.msra.mxu0 %v223
  %1028 = vmatpush.msra.mxu0 %v219
  %1029 = vmatpush.msra.mxu0 %v215
  %1030 = vmatpush.msra.mxu0 %v211
  %1031 = vmatpush.msra.mxu0 %v207
  %1032 = vmatpush.msra.mxu0 %v203
  %1033 = vmatpush.msra.mxu0 %v199
  %1034 = vmatmul.f32.gmra.mxu0 %v1013
  %v1035 = vpop.f32.mrf.mxu0
  %v1036 = vadd.f32 0.0, %v1035
  %1037 = vdwg.mxu0
  %1038 = vmatpush.msra.mxu0 %v260
  %1039 = vmatpush.msra.mxu0 %v256
  %1040 = vmatpush.msra.mxu0 %v252
  %1041 = vmatpush.msra.mxu0 %v248
  %1042 = vmatpush.msra.mxu0 %v244
  %1043 = vmatpush.msra.mxu0 %v240
  %1044 = vmatpush.msra.mxu0 %v236
  %1045 = vmatpush.msra.mxu0 %v232
  %1046 = vmatpush.msra.mxu0 %v228
  %1047 = vmatpush.msra.mxu0 %v224
  %1048 = vmatpush.msra.mxu0 %v220
  %1049 = vmatpush.msra.mxu0 %v216
  %1050 = vmatpush.msra.mxu0 %v212
  %1051 = vmatpush.msra.mxu0 %v208
  %1052 = vmatpush.msra.mxu0 %v204
  %1053 = vmatpush.msra.mxu0 %v200
  %1054 = vmatmul.f32.gmra.mxu0 %v1013
  %v1055 = vpop.f32.mrf.mxu0
  %v1056 = vadd.f32 0.0, %v1055
  %1057 = vdwg.mxu0
  %1058 = vmatpush.msra.mxu0 %v261
  %1059 = vmatpush.msra.mxu0 %v257
  %1060 = vmatpush.msra.mxu0 %v253
  %1061 = vmatpush.msra.mxu0 %v249
  %1062 = vmatpush.msra.mxu0 %v245
  %1063 = vmatpush.msra.mxu0 %v241
  %1064 = vmatpush.msra.mxu0 %v237
  %1065 = vmatpush.msra.mxu0 %v233
  %1066 = vmatpush.msra.mxu0 %v229
  %1067 = vmatpush.msra.mxu0 %v225
  %1068 = vmatpush.msra.mxu0 %v221
  %1069 = vmatpush.msra.mxu0 %v217
  %1070 = vmatpush.msra.mxu0 %v213
  %1071 = vmatpush.msra.mxu0 %v209
  %1072 = vmatpush.msra.mxu0 %v205
  %1073 = vmatpush.msra.mxu0 %v201
  %1074 = vmatmul.f32.gmra.mxu0 %v1013
  %v1075 = vpop.f32.mrf.mxu0
  %v1076 = vadd.f32 0.0, %v1075
  %1077 = vdwg.mxu0
  %1078 = vmatpush.msra.mxu0 %v262
  %1079 = vmatpush.msra.mxu0 %v258
  %1080 = vmatpush.msra.mxu0 %v254
  %1081 = vmatpush.msra.mxu0 %v250
  %1082 = vmatpush.msra.mxu0 %v246
  %1083 = vmatpush.msra.mxu0 %v242
  %1084 = vmatpush.msra.mxu0 %v238
  %1085 = vmatpush.msra.mxu0 %v234
  %1086 = vmatpush.msra.mxu0 %v230
  %1087 = vmatpush.msra.mxu0 %v226
  %1088 = vmatpush.msra.mxu0 %v222
  %1089 = vmatpush.msra.mxu0 %v218
  %1090 = vmatpush.msra.mxu0 %v214
  %1091 = vmatpush.msra.mxu0 %v210
  %1092 = vmatpush.msra.mxu0 %v206
  %1093 = vmatpush.msra.mxu0 %v202
  %1094 = vmatmul.f32.gmra.mxu0 %v1013
  %v1095 = vpop.f32.mrf.mxu0
  %v1096 = vadd.f32 0.0, %v1095
  %1097 = vdwg.mxu0
  %v1098 = vadd.f32 %v1014, %v1036
  %v1099 = vadd.f32 %v1015, %v1056
  %v1100 = vadd.f32 %v1016, %v1076
  %v1101 = vadd.f32 %v1017, %v1096
  %v1102 = vxor.u32 %v1098, 2147483648
  %v1103 = vmul.f32 %v1102, 1.442695
  %v1104 = vpow.pop %v1103
  %v1105 = vadd.f32 %v1104, 1.0
  %v1106 = vrcp.pop %v1105
  %v1107 = vmul.f32 %v1105, %v1106
  %v1108 = vsub.f32 1.0, %v1107
  %v1109 = vmul.f32 %v1106, %v1108
  %v1110 = vadd.f32 %v1106, %v1109
  %vm1111 = vweird.f32 %v1105
  %vm1112 = vweird.f32 %v1106
  %vm1113 = vmor %vm1111, %vm1112
  %v1114 = vsel %vm1113, %v1106, %v1110
  %v1115 = vand.u32 2147483647, %v1105
  %vm1116 = vcmp.eq.f32.partialorder %v1115, 8.507059e+37
  %v1117 = vand.u32 %v1105, 2147483648
  %v1118 = vor.u32 1.1754944e-38, %v1117
  %v1119 = vsel %vm1116, %v1118, %v1114
  %v1120 = vmul.f32 1.0, %v1119
  %v1121 = vxor.u32 %v1099, 2147483648
  %v1122 = vmul.f32 %v1121, 1.442695
  %v1123 = vpow.pop %v1122
  %v1124 = vadd.f32 %v1123, 1.0
  %v1125 = vrcp.pop %v1124
  %v1126 = vmul.f32 %v1124, %v1125
  %v1127 = vsub.f32 1.0, %v1126
  %v1128 = vmul.f32 %v1125, %v1127
  %v1129 = vadd.f32 %v1125, %v1128
  %vm1130 = vweird.f32 %v1124
  %vm1131 = vweird.f32 %v1125
  %vm1132 = vmor %vm1130, %vm1131
  %v1133 = vsel %vm1132, %v1125, %v1129
  %v1134 = vand.u32 2147483647, %v1124
  %vm1135 = vcmp.eq.f32.partialorder %v1134, 8.507059e+37
  %v1136 = vand.u32 %v1124, 2147483648
  %v1137 = vor.u32 1.1754944e-38, %v1136
  %v1138 = vsel %vm1135, %v1137, %v1133
  %v1139 = vmul.f32 1.0, %v1138
  %v1140 = vtanh.pop %v1100
  %v1141 = vxor.u32 %v1101, 2147483648
  %v1142 = vmul.f32 %v1141, 1.442695
  %v1143 = vpow.pop %v1142
  %v1144 = vadd.f32 %v1143, 1.0
  %v1145 = vrcp.pop %v1144
  %v1146 = vmul.f32 %v1144, %v1145
  %v1147 = vsub.f32 1.0, %v1146
  %v1148 = vmul.f32 %v1145, %v1147
  %v1149 = vadd.f32 %v1145, %v1148
  %vm1150 = vweird.f32 %v1144
  %vm1151 = vweird.f32 %v1145
  %vm1152 = vmor %vm1150, %vm1151
  %v1153 = vsel %vm1152, %v1145, %v1149
  %v1154 = vand.u32 2147483647, %v1144
  %vm1155 = vcmp.eq.f32.partialorder %v1154, 8.507059e+37
  %v1156 = vand.u32 %v1144, 2147483648
  %v1157 = vor.u32 1.1754944e-38, %v1156
  %v1158 = vsel %vm1155, %v1157, %v1153
  %v1159 = vmul.f32 1.0, %v1158
  %v1160 = vmul.f32 %v1139, %v1011
  %v1161 = vmul.f32 %v1120, %v1140
  %v1162 = vadd.f32 %v1160, %v1161
  %v1163 = vtanh.pop %v1162
  %v1164 = vmul.f32 %v1159, %v1163
  %v1165 = vld [vmem:[#allocation2 + $0xc0] sm:$0xff]
  %v1166 = vld [vmem:[#allocation2 + $0xc8] sm:$0xff]
  %v1167 = vld [vmem:[#allocation2 + $0xd0] sm:$0xff]
  %v1168 = vld [vmem:[#allocation2 + $0xd8] sm:$0xff]
  %1169 = vmatpush.msra.mxu0 %v259
  %1170 = vmatpush.msra.mxu0 %v255
  %1171 = vmatpush.msra.mxu0 %v251
  %1172 = vmatpush.msra.mxu0 %v247
  %1173 = vmatpush.msra.mxu0 %v243
  %1174 = vmatpush.msra.mxu0 %v239
  %1175 = vmatpush.msra.mxu0 %v235
  %1176 = vmatpush.msra.mxu0 %v231
  %1177 = vmatpush.msra.mxu0 %v227
  %1178 = vmatpush.msra.mxu0 %v223
  %1179 = vmatpush.msra.mxu0 %v219
  %1180 = vmatpush.msra.mxu0 %v215
  %1181 = vmatpush.msra.mxu0 %v211
  %1182 = vmatpush.msra.mxu0 %v207
  %1183 = vmatpush.msra.mxu0 %v203
  %1184 = vmatpush.msra.mxu0 %v199
  %1185 = vmatmul.f32.gmra.mxu0 %v1164
  %v1186 = vpop.f32.mrf.mxu0
  %v1187 = vadd.f32 0.0, %v1186
  %1188 = vdwg.mxu0
  %1189 = vmatpush.msra.mxu0 %v260
  %1190 = vmatpush.msra.mxu0 %v256
  %1191 = vmatpush.msra.mxu0 %v252
  %1192 = vmatpush.msra.mxu0 %v248
  %1193 = vmatpush.msra.mxu0 %v244
  %1194 = vmatpush.msra.mxu0 %v240
  %1195 = vmatpush.msra.mxu0 %v236
  %1196 = vmatpush.msra.mxu0 %v232
  %1197 = vmatpush.msra.mxu0 %v228
  %1198 = vmatpush.msra.mxu0 %v224
  %1199 = vmatpush.msra.mxu0 %v220
  %1200 = vmatpush.msra.mxu0 %v216
  %1201 = vmatpush.msra.mxu0 %v212
  %1202 = vmatpush.msra.mxu0 %v208
  %1203 = vmatpush.msra.mxu0 %v204
  %1204 = vmatpush.msra.mxu0 %v200
  %1205 = vmatmul.f32.gmra.mxu0 %v1164
  %v1206 = vpop.f32.mrf.mxu0
  %v1207 = vadd.f32 0.0, %v1206
  %1208 = vdwg.mxu0
  %1209 = vmatpush.msra.mxu0 %v261
  %1210 = vmatpush.msra.mxu0 %v257
  %1211 = vmatpush.msra.mxu0 %v253
  %1212 = vmatpush.msra.mxu0 %v249
  %1213 = vmatpush.msra.mxu0 %v245
  %1214 = vmatpush.msra.mxu0 %v241
  %1215 = vmatpush.msra.mxu0 %v237
  %1216 = vmatpush.msra.mxu0 %v233
  %1217 = vmatpush.msra.mxu0 %v229
  %1218 = vmatpush.msra.mxu0 %v225
  %1219 = vmatpush.msra.mxu0 %v221
  %1220 = vmatpush.msra.mxu0 %v217
  %1221 = vmatpush.msra.mxu0 %v213
  %1222 = vmatpush.msra.mxu0 %v209
  %1223 = vmatpush.msra.mxu0 %v205
  %1224 = vmatpush.msra.mxu0 %v201
  %1225 = vmatmul.f32.gmra.mxu0 %v1164
  %v1226 = vpop.f32.mrf.mxu0
  %v1227 = vadd.f32 0.0, %v1226
  %1228 = vdwg.mxu0
  %1229 = vmatpush.msra.mxu0 %v262
  %1230 = vmatpush.msra.mxu0 %v258
  %1231 = vmatpush.msra.mxu0 %v254
  %1232 = vmatpush.msra.mxu0 %v250
  %1233 = vmatpush.msra.mxu0 %v246
  %1234 = vmatpush.msra.mxu0 %v242
  %1235 = vmatpush.msra.mxu0 %v238
  %1236 = vmatpush.msra.mxu0 %v234
  %1237 = vmatpush.msra.mxu0 %v230
  %1238 = vmatpush.msra.mxu0 %v226
  %1239 = vmatpush.msra.mxu0 %v222
  %1240 = vmatpush.msra.mxu0 %v218
  %1241 = vmatpush.msra.mxu0 %v214
  %1242 = vmatpush.msra.mxu0 %v210
  %1243 = vmatpush.msra.mxu0 %v206
  %1244 = vmatpush.msra.mxu0 %v202
  %1245 = vmatmul.f32.gmra.mxu0 %v1164
  %v1246 = vpop.f32.mrf.mxu0
  %v1247 = vadd.f32 0.0, %v1246
  %1248 = vdwg.mxu0
  %v1249 = vadd.f32 %v1165, %v1187
  %v1250 = vadd.f32 %v1166, %v1207
  %v1251 = vadd.f32 %v1167, %v1227
  %v1252 = vadd.f32 %v1168, %v1247
  %v1253 = vxor.u32 %v1249, 2147483648
  %v1254 = vmul.f32 %v1253, 1.442695
  %v1255 = vpow.pop %v1254
  %v1256 = vadd.f32 %v1255, 1.0
  %v1257 = vrcp.pop %v1256
  %v1258 = vmul.f32 %v1256, %v1257
  %v1259 = vsub.f32 1.0, %v1258
  %v1260 = vmul.f32 %v1257, %v1259
  %v1261 = vadd.f32 %v1257, %v1260
  %vm1262 = vweird.f32 %v1256
  %vm1263 = vweird.f32 %v1257
  %vm1264 = vmor %vm1262, %vm1263
  %v1265 = vsel %vm1264, %v1257, %v1261
  %v1266 = vand.u32 2147483647, %v1256
  %vm1267 = vcmp.eq.f32.partialorder %v1266, 8.507059e+37
  %v1268 = vand.u32 %v1256, 2147483648
  %v1269 = vor.u32 1.1754944e-38, %v1268
  %v1270 = vsel %vm1267, %v1269, %v1265
  %v1271 = vmul.f32 1.0, %v1270
  %v1272 = vxor.u32 %v1250, 2147483648
  %v1273 = vmul.f32 %v1272, 1.442695
  %v1274 = vpow.pop %v1273
  %v1275 = vadd.f32 %v1274, 1.0
  %v1276 = vrcp.pop %v1275
  %v1277 = vmul.f32 %v1275, %v1276
  %v1278 = vsub.f32 1.0, %v1277
  %v1279 = vmul.f32 %v1276, %v1278
  %v1280 = vadd.f32 %v1276, %v1279
  %vm1281 = vweird.f32 %v1275
  %vm1282 = vweird.f32 %v1276
  %vm1283 = vmor %vm1281, %vm1282
  %v1284 = vsel %vm1283, %v1276, %v1280
  %v1285 = vand.u32 2147483647, %v1275
  %vm1286 = vcmp.eq.f32.partialorder %v1285, 8.507059e+37
  %v1287 = vand.u32 %v1275, 2147483648
  %v1288 = vor.u32 1.1754944e-38, %v1287
  %v1289 = vsel %vm1286, %v1288, %v1284
  %v1290 = vmul.f32 1.0, %v1289
  %v1291 = vtanh.pop %v1251
  %v1292 = vxor.u32 %v1252, 2147483648
  %v1293 = vmul.f32 %v1292, 1.442695
  %v1294 = vpow.pop %v1293
  %v1295 = vadd.f32 %v1294, 1.0
  %v1296 = vrcp.pop %v1295
  %v1297 = vmul.f32 %v1295, %v1296
  %v1298 = vsub.f32 1.0, %v1297
  %v1299 = vmul.f32 %v1296, %v1298
  %v1300 = vadd.f32 %v1296, %v1299
  %vm1301 = vweird.f32 %v1295
  %vm1302 = vweird.f32 %v1296
  %vm1303 = vmor %vm1301, %vm1302
  %v1304 = vsel %vm1303, %v1296, %v1300
  %v1305 = vand.u32 2147483647, %v1295
  %vm1306 = vcmp.eq.f32.partialorder %v1305, 8.507059e+37
  %v1307 = vand.u32 %v1295, 2147483648
  %v1308 = vor.u32 1.1754944e-38, %v1307
  %v1309 = vsel %vm1306, %v1308, %v1304
  %v1310 = vmul.f32 1.0, %v1309
  %v1311 = vmul.f32 %v1290, %v1162
  %v1312 = vmul.f32 %v1271, %v1291
  %v1313 = vadd.f32 %v1311, %v1312
  %v1314 = vtanh.pop %v1313
  %v1315 = vmul.f32 %v1310, %v1314
  %v1316 = vld [vmem:[#allocation2 + $0xe0] sm:$0xff]
  %v1317 = vld [vmem:[#allocation2 + $0xe8] sm:$0xff]
  %v1318 = vld [vmem:[#allocation2 + $0xf0] sm:$0xff]
  %v1319 = vld [vmem:[#allocation2 + $0xf8] sm:$0xff]
  %1320 = vmatpush.msra.mxu0 %v259
  %1321 = vmatpush.msra.mxu0 %v255
  %1322 = vmatpush.msra.mxu0 %v251
  %1323 = vmatpush.msra.mxu0 %v247
  %1324 = vmatpush.msra.mxu0 %v243
  %1325 = vmatpush.msra.mxu0 %v239
  %1326 = vmatpush.msra.mxu0 %v235
  %1327 = vmatpush.msra.mxu0 %v231
  %1328 = vmatpush.msra.mxu0 %v227
  %1329 = vmatpush.msra.mxu0 %v223
  %1330 = vmatpush.msra.mxu0 %v219
  %1331 = vmatpush.msra.mxu0 %v215
  %1332 = vmatpush.msra.mxu0 %v211
  %1333 = vmatpush.msra.mxu0 %v207
  %1334 = vmatpush.msra.mxu0 %v203
  %1335 = vmatpush.msra.mxu0 %v199
  %1336 = vmatmul.f32.gmra.mxu0 %v1315
  %v1337 = vpop.f32.mrf.mxu0
  %v1338 = vadd.f32 0.0, %v1337
  %1339 = vdwg.mxu0
  %1340 = vmatpush.msra.mxu0 %v260
  %1341 = vmatpush.msra.mxu0 %v256
  %1342 = vmatpush.msra.mxu0 %v252
  %1343 = vmatpush.msra.mxu0 %v248
  %1344 = vmatpush.msra.mxu0 %v244
  %1345 = vmatpush.msra.mxu0 %v240
  %1346 = vmatpush.msra.mxu0 %v236
  %1347 = vmatpush.msra.mxu0 %v232
  %1348 = vmatpush.msra.mxu0 %v228
  %1349 = vmatpush.msra.mxu0 %v224
  %1350 = vmatpush.msra.mxu0 %v220
  %1351 = vmatpush.msra.mxu0 %v216
  %1352 = vmatpush.msra.mxu0 %v212
  %1353 = vmatpush.msra.mxu0 %v208
  %1354 = vmatpush.msra.mxu0 %v204
  %1355 = vmatpush.msra.mxu0 %v200
  %1356 = vmatmul.f32.gmra.mxu0 %v1315
  %v1357 = vpop.f32.mrf.mxu0
  %v1358 = vadd.f32 0.0, %v1357
  %1359 = vdwg.mxu0
  %1360 = vmatpush.msra.mxu0 %v261
  %1361 = vmatpush.msra.mxu0 %v257
  %1362 = vmatpush.msra.mxu0 %v253
  %1363 = vmatpush.msra.mxu0 %v249
  %1364 = vmatpush.msra.mxu0 %v245
  %1365 = vmatpush.msra.mxu0 %v241
  %1366 = vmatpush.msra.mxu0 %v237
  %1367 = vmatpush.msra.mxu0 %v233
  %1368 = vmatpush.msra.mxu0 %v229
  %1369 = vmatpush.msra.mxu0 %v225
  %1370 = vmatpush.msra.mxu0 %v221
  %1371 = vmatpush.msra.mxu0 %v217
  %1372 = vmatpush.msra.mxu0 %v213
  %1373 = vmatpush.msra.mxu0 %v209
  %1374 = vmatpush.msra.mxu0 %v205
  %1375 = vmatpush.msra.mxu0 %v201
  %1376 = vmatmul.f32.gmra.mxu0 %v1315
  %v1377 = vpop.f32.mrf.mxu0
  %v1378 = vadd.f32 0.0, %v1377
  %1379 = vdwg.mxu0
  %1380 = vmatpush.msra.mxu0 %v262
  %1381 = vmatpush.msra.mxu0 %v258
  %1382 = vmatpush.msra.mxu0 %v254
  %1383 = vmatpush.msra.mxu0 %v250
  %1384 = vmatpush.msra.mxu0 %v246
  %1385 = vmatpush.msra.mxu0 %v242
  %1386 = vmatpush.msra.mxu0 %v238
  %1387 = vmatpush.msra.mxu0 %v234
  %1388 = vmatpush.msra.mxu0 %v230
  %1389 = vmatpush.msra.mxu0 %v226
  %1390 = vmatpush.msra.mxu0 %v222
  %1391 = vmatpush.msra.mxu0 %v218
  %1392 = vmatpush.msra.mxu0 %v214
  %1393 = vmatpush.msra.mxu0 %v210
  %1394 = vmatpush.msra.mxu0 %v206
  %1395 = vmatpush.msra.mxu0 %v202
  %1396 = vmatmul.f32.gmra.mxu0 %v1315
  %v1397 = vpop.f32.mrf.mxu0
  %v1398 = vadd.f32 0.0, %v1397
  %1399 = vdwg.mxu0
  %v1400 = vadd.f32 %v1316, %v1338
  %v1401 = vadd.f32 %v1317, %v1358
  %v1402 = vadd.f32 %v1318, %v1378
  %v1403 = vadd.f32 %v1319, %v1398
  %v1404 = vxor.u32 %v1400, 2147483648
  %v1405 = vmul.f32 %v1404, 1.442695
  %v1406 = vpow.pop %v1405
  %v1407 = vadd.f32 %v1406, 1.0
  %v1408 = vrcp.pop %v1407
  %v1409 = vmul.f32 %v1407, %v1408
  %v1410 = vsub.f32 1.0, %v1409
  %v1411 = vmul.f32 %v1408, %v1410
  %v1412 = vadd.f32 %v1408, %v1411
  %vm1413 = vweird.f32 %v1407
  %vm1414 = vweird.f32 %v1408
  %vm1415 = vmor %vm1413, %vm1414
  %v1416 = vsel %vm1415, %v1408, %v1412
  %v1417 = vand.u32 2147483647, %v1407
  %vm1418 = vcmp.eq.f32.partialorder %v1417, 8.507059e+37
  %v1419 = vand.u32 %v1407, 2147483648
  %v1420 = vor.u32 1.1754944e-38, %v1419
  %v1421 = vsel %vm1418, %v1420, %v1416
  %v1422 = vmul.f32 1.0, %v1421
  %v1423 = vxor.u32 %v1401, 2147483648
  %v1424 = vmul.f32 %v1423, 1.442695
  %v1425 = vpow.pop %v1424
  %v1426 = vadd.f32 %v1425, 1.0
  %v1427 = vrcp.pop %v1426
  %v1428 = vmul.f32 %v1426, %v1427
  %v1429 = vsub.f32 1.0, %v1428
  %v1430 = vmul.f32 %v1427, %v1429
  %v1431 = vadd.f32 %v1427, %v1430
  %vm1432 = vweird.f32 %v1426
  %vm1433 = vweird.f32 %v1427
  %vm1434 = vmor %vm1432, %vm1433
  %v1435 = vsel %vm1434, %v1427, %v1431
  %v1436 = vand.u32 2147483647, %v1426
  %vm1437 = vcmp.eq.f32.partialorder %v1436, 8.507059e+37
  %v1438 = vand.u32 %v1426, 2147483648
  %v1439 = vor.u32 1.1754944e-38, %v1438
  %v1440 = vsel %vm1437, %v1439, %v1435
  %v1441 = vmul.f32 1.0, %v1440
  %v1442 = vtanh.pop %v1402
  %v1443 = vxor.u32 %v1403, 2147483648
  %v1444 = vmul.f32 %v1443, 1.442695
  %v1445 = vpow.pop %v1444
  %v1446 = vadd.f32 %v1445, 1.0
  %v1447 = vrcp.pop %v1446
  %v1448 = vmul.f32 %v1446, %v1447
  %v1449 = vsub.f32 1.0, %v1448
  %v1450 = vmul.f32 %v1447, %v1449
  %v1451 = vadd.f32 %v1447, %v1450
  %vm1452 = vweird.f32 %v1446
  %vm1453 = vweird.f32 %v1447
  %vm1454 = vmor %vm1452, %vm1453
  %v1455 = vsel %vm1454, %v1447, %v1451
  %v1456 = vand.u32 2147483647, %v1446
  %vm1457 = vcmp.eq.f32.partialorder %v1456, 8.507059e+37
  %v1458 = vand.u32 %v1446, 2147483648
  %v1459 = vor.u32 1.1754944e-38, %v1458
  %v1460 = vsel %vm1457, %v1459, %v1455
  %v1461 = vmul.f32 1.0, %v1460
  %v1462 = vmul.f32 %v1441, %v1313
  %v1463 = vmul.f32 %v1422, %v1442
  %v1464 = vadd.f32 %v1462, %v1463
  %v1465 = vtanh.pop %v1464
  %v1466 = vmul.f32 %v1461, %v1465
  %v1467 = vld [vmem:[%s5] sm:$0x1]
  %v1469 = vperm.slane %v1467, 0
  %v1471 = vmul.f32 %v1466, %v1469
  %1472 = vadd.xlane.f32.xlu0 %v1471
  %v1473 = vpop.xlane.xlu0 %1472
  %v1474 = vld [vmem:[%s4] sm:$0xff]
  %v1475 = vld [vmem:[%s6] sm:$0x1]
  %v1477 = vperm.slane %v1475, 0
  %v1479 = vmul.f32 %v1474, %v1477
  %vm1480 = vcmask 64512
  %v1481 = vsel %vm1480, %v1479, 0.0
  %1482 = vadd.xlane.f32.xlu0 %v1481
  %v1483 = vpop.xlane.xlu0 %1482
  %v1484 = vadd.f32 %v1473, %v1483
  %v1485 = vld [vmem:[#allocation3] sm:$0x1]
  %v1487 = vperm.slane %v1485, 0
  %v1489 = vadd.f32 %v1484, %v1487
  %vm1490 = vcmask 7168
  %1491 = vst.msk [vmem:[%s8] sm:$0xff] %vm1490, %v1489
  // Predicated region
  $region34: #{lstm_country_forward.1} parent=0 // pred_check
    _
  $region35: #{lstm_country_forward.1} parent=0 // pred_check_branch
    %1493 = sbr.rel (0) target = $region37
  $region36: #{lstm_country_forward.1} parent=0 // pred_region
    _
  $region37: #{lstm_country_forward.1} parent=0 // pred_fallthru
    _
  // Predicated region
  $region38: #{lstm_country_forward.1} parent=0 // pred_check
    _
  $region39: #{lstm_country_forward.1} parent=0 // pred_check_branch
    %1495 = sbr.rel (0) target = $region41
  $region40: #{lstm_country_forward.1} parent=0 // pred_region
    _
  $region41: #{lstm_country_forward.1} parent=0 // pred_fallthru
    _

</llo_original>
